<compile_context>
chip_gen: v6e
topology: v6e:2x2x1
jax: 0.10.0
libtpu: 0.0.40
codegen_flags: <defaults>
</compile_context>

<pallas_src>
import math
import functools

import numpy as np
import jax
import jax.numpy as jnp
from jax.experimental import pallas as pl
from jax.experimental.pallas import tpu as pltpu


def _dilation_config(layer, left_kernel, latency):
    shifts = [-round((1 + layer) / 11 * latency)]
    shifts += [j * (2 ** layer) for j in range(left_kernel)]
    pad = (2 ** layer) * (left_kernel - 1)
    return tuple(shifts), pad


def _mhsa_kernel(xq_ref, xk_ref, xv_ref,
                 wq_ref, wk_ref, wv_ref, b_ref,
                 er_bd_ref, sel_ref, selt_ref, gg_ref, rsum_ref,
                 out_ref, attn_ref, *, shifts, pad, head_dim):
    T = xq_ref.shape[1]
    D = xq_ref.shape[2]
    L = T + pad
    inv_scale = jnp.float32(1.0 / math.sqrt(head_dim))

    xq = xq_ref[0]                      # (T, D)
    xk = xk_ref[0]
    xv = xv_ref[0]

    # Full-width projections (MXU), bias rows stacked in b_ref = [bq; bk; bv].
    q = jnp.dot(xq, wq_ref[...], preferred_element_type=jnp.float32) + b_ref[0:1, :]
    k = jnp.dot(xk, wk_ref[...], preferred_element_type=jnp.float32) + b_ref[1:2, :]
    v = jnp.dot(xv, wv_ref[...], preferred_element_type=jnp.float32) + b_ref[2:3, :]

    # torch.roll(pad(x, (0,pad)), s, dims=time)[:T]  ==  ext[L - (s % L) : ... + T]
    # where ext = [x ; zeros(pad) ; x] has length L + T, L = T + pad.  Exact for any
    # static shift (including the wrap-around of negative shifts).
    if pad > 0:
        zpad = jnp.zeros((pad, D), jnp.float32)
        k_ext = jnp.concatenate([k, zpad, k], axis=0)       # (L + T, D)
        v_ext = jnp.concatenate([v, zpad, v], axis=0)
    else:
        k_ext = jnp.concatenate([k, k], axis=0)
        v_ext = jnp.concatenate([v, v], axis=0)

    prod_parts = []
    v_parts = []
    for s in shifts:                                        # static Python loop, len == S
        start = L - (s % L)                                 # static int in (0, L]
        k_s = k_ext[start:start + T, :]                     # (T, D) static slice
        v_s = v_ext[start:start + T, :]
        prod_parts.append(q * k_s)                          # VPU
        v_parts.append(v_s)
    prod_all = jnp.concatenate(prod_parts, axis=1)          # (T, S*D)  lane-dense
    v_all = jnp.concatenate(v_parts, axis=1)                # (T, S*D)

    # qk[t, h*S + s] = <q_h[t], k_{s,h}[t]>  via one packed MXU matmul.
    qk = jnp.dot(prod_all, sel_ref[...], preferred_element_type=jnp.float32)   # (T, H*S)
    # Relative positional term for all heads, Er packed block-diagonally.
    rel = jnp.dot(q, er_bd_ref[...], preferred_element_type=jnp.float32)       # (T, H*S)

    attn_mask = jnp.where(qk == 0.0, jnp.float32(1e-9), jnp.float32(0.0))
    logits = (qk + rel) * inv_scale + attn_mask

    # Grouped softmax over each head's S contiguous lanes, kept lane-dense:
    # subtracting the global per-row max is exact (constant within every group);
    # the per-group sum is broadcast back with the block-diagonal ones matrix GG.
    row_max = jnp.max(logits, axis=-1, keepdims=True)       # (T, 1)
    e = jnp.exp(logits - row_max)                           # (T, H*S) (EUP)
    denom = jnp.dot(e, gg_ref[...], preferred_element_type=jnp.float32)        # (T, H*S)
    attn = e / denom                                        # (T, H*S)

    # out[t, h*Dh + d] = sum_s attn[t, h*S + s] * v_s[t, h*Dh + d]
    a_exp = jnp.dot(attn, selt_ref[...], preferred_element_type=jnp.float32)   # (T, S*D)
    out = jnp.dot(a_exp * v_all, rsum_ref[...], preferred_element_type=jnp.float32)  # (T, D)

    out_ref[0] = out.astype(out_ref.dtype)                  # lane-dense (T, D) store
    attn_ref[0] = attn.astype(attn_ref.dtype)               # lane-dense (T, H*S) store


def dilated_mhsa_pallas(xq, xk, xv, wq, bq, wk, bk, wv, bv, er,
                        layer=0, left_kernel=5, latency=10):
    B, T, D = xq.shape
    H, Dh, S = er.shape
    assert D == H * Dh, "embed_dim must be divisible by num_heads"
    assert H <= 8, "reference implementation only valid for num_heads <= 8 (k[:, 0:8])"
    assert S == left_kernel + 1

    shifts, pad = _dilation_config(layer, left_kernel, latency)
    HS = H * S
    SD = S * D

    # ---- host-side constant selection matrices (compile-time glue) -------------
    # SEL[s*D + h*Dh + d, h*S + s] = 1  (gathers per-(head,shift) dot products)
    sel_np = np.zeros((SD, HS), np.float32)
    for s in range(S):
        for h in range(H):
            rows = s * D + h * Dh + np.arange(Dh)
            sel_np[rows, h * S + s] = 1.0
    sel = jnp.asarray(sel_np)
    selt = jnp.asarray(np.ascontiguousarray(sel_np.T))                 # (HS, SD)
    gg = jnp.asarray(np.kron(np.eye(H, dtype=np.float32),
                             np.ones((S, S), np.float32)))             # (HS, HS)
    rsum = jnp.asarray(np.tile(np.eye(D, dtype=np.float32), (S, 1)))   # (SD, D)

    # Er packed block-diagonally: er_bd[h*Dh + d, h*S + s] = Er[h, d, s]
    er_bd = jnp.einsum('hg,hds->hdgs', jnp.eye(H, dtype=jnp.float32),
                       er.astype(jnp.float32)).reshape(D, HS)

    b_all = jnp.stack([bq, bk, bv], axis=0).astype(jnp.float32)        # (3, D)

    kernel = functools.partial(_mhsa_kernel, shifts=shifts, pad=pad, head_dim=Dh)

    act_spec = pl.BlockSpec((1, T, D), lambda b: (b, 0, 0))

    def const_spec(shape):
        nd = len(shape)
        return pl.BlockSpec(shape, lambda b, _nd=nd: (0,) * _nd)

    flops = int(B * (3 * 2 * T * D * D        # q/k/v projections
                     + 2 * T * SD * HS        # packed score matmul
                     + 2 * T * D * HS         # relative term
                     + 2 * T * HS * HS        # grouped-softmax denominator
                     + 2 * T * HS * SD        # attention expansion
                     + 2 * T * SD * D))       # output reduction
    transcendentals = int(B * T * HS)
    bytes_accessed = int(4 * (3 * B * T * D + 3 * D * D + 3 * D + D * HS
                              + 2 * SD * HS + HS * HS + SD * D
                              + B * T * D + B * T * HS))
    cost = pl.CostEstimate(flops=flops, transcendentals=transcendentals,
                           bytes_accessed=bytes_accessed)

    # NOTE(v7x): for long sequences, add a T-tile grid axis and set
    # pltpu.CompilerParams(vmem_limit_bytes=...) to respect the 64 MiB VMEM budget.
    out, attn_flat = pl.pallas_call(
        kernel,
        out_shape=(jax.ShapeDtypeStruct((B, T, D), jnp.float32),
                   jax.ShapeDtypeStruct((B, T, HS), jnp.float32)),
        grid=(B,),
        in_specs=[act_spec, act_spec, act_spec,
                  const_spec((D, D)), const_spec((D, D)), const_spec((D, D)),
                  const_spec((3, D)),
                  const_spec((D, HS)), const_spec((SD, HS)),
                  const_spec((HS, SD)), const_spec((HS, HS)), const_spec((SD, D))],
        out_specs=(pl.BlockSpec((1, T, D), lambda b: (b, 0, 0)),
                   pl.BlockSpec((1, T, HS), lambda b: (b, 0, 0))),
        compiler_params=pltpu.CompilerParams(
            dimension_semantics=("parallel",)),
        cost_estimate=cost,
    )(xq.astype(jnp.float32), xk.astype(jnp.float32), xv.astype(jnp.float32),
      wq.astype(jnp.float32), wk.astype(jnp.float32), wv.astype(jnp.float32),
      b_all, er_bd, sel, selt, gg, rsum)

    # attn -> (B, H, T, 1, S) like the PyTorch module (layout plumbing outside kernel)
    attn = attn_flat.reshape(B, T, H, S).transpose(0, 2, 1, 3).reshape(B, H, T, 1, S)
    # dropout p = 0 -> identity
    return out, attn


def dilated_mhsa_ref(xq, xk, xv, wq, bq, wk, bk, wv, bv, er,
                     layer=0, left_kernel=5, latency=10):
    """Pure-JAX reference mirroring the PyTorch forward, for validation."""
    B, T, D = xq.shape
    H, Dh, S = er.shape
    shifts, pad = _dilation_config(layer, left_kernel, latency)

    def proj(x, w, b):
        y = x @ w + b
        return y.reshape(B, T, H, Dh).transpose(0, 2, 1, 3)   # (B,H,T,Dh)

    q = proj(xq, wq, bq)
    k = proj(xk, wk, bk)
    v = proj(xv, wv, bv)

    def roll_stack(x):
        xp = jnp.pad(x, ((0, 0), (0, 0), (0, pad), (0, 0)))
        return jnp.stack([jnp.roll(xp, s, axis=2)[:, :, :T] for s in shifts],
                         axis=3)                               # (B,H,T,S,Dh)

    kr = roll_stack(k)
    vr = roll_stack(v)
    qk = jnp.einsum('bhtd,bhtsd->bhts', q, kr)
    rel = jnp.einsum('bhtd,hds->bhts', q, er)
    mask = jnp.where(qk == 0.0, 1e-9, 0.0)
    attn = jax.nn.softmax((qk + rel) / math.sqrt(Dh) + mask, axis=-1)
    out = jnp.einsum('bhts,bhtsd->bhtd', attn, vr)
    out = out.transpose(0, 2, 1, 3).reshape(B, T, D)
    return out, attn.reshape(B, H, T, 1, S)


if __name__ == "__main__":
    # MainModule defaults: dmodel=64, nhead=8, attn_len=5  (head_dim=8, S=6)
    B, T, D, H = 2, 16, 64, 8
    Dh = D // H
    left_kernel, latency = 5, 10
    S = left_kernel + 1

    key = jax.random.PRNGKey(0)
    ks = jax.random.split(key, 10)
    xq = jax.random.normal(ks[0], (B, T, D), jnp.float32)
    xk = jax.random.normal(ks[1], (B, T, D), jnp.float32)
    xv = jax.random.normal(ks[2], (B, T, D), jnp.float32)
    scale = 0.2
    wq = scale * jax.random.normal(ks[3], (D, D), jnp.float32)
    wk = scale * jax.random.normal(ks[4], (D, D), jnp.float32)
    wv = scale * jax.random.normal(ks[5], (D, D), jnp.float32)
    bq = scale * jax.random.normal(ks[6], (D,), jnp.float32)
    bk = scale * jax.random.normal(ks[7], (D,), jnp.float32)
    bv = scale * jax.random.normal(ks[8], (D,), jnp.float32)
    er = jax.random.normal(ks[9], (H, Dh, S), jnp.float32)   # nn.Parameter(randn(H, Dh, S))

    for layer in (0, 1):   # exercise both undilated and dilated shift configs
        out, attn = dilated_mhsa_pallas(xq, xk, xv, wq, bq, wk, bk, wv, bv, er,
                                        layer=layer, left_kernel=left_kernel,
                                        latency=latency)
        jax.block_until_ready((out, attn))

        out_ref, attn_ref = dilated_mhsa_ref(xq, xk, xv, wq, bq, wk, bk, wv, bv, er,
                                             layer=layer, left_kernel=left_kernel,
                                             latency=latency)

        assert out.shape == (B, T, D)
        assert attn.shape == (B, H, T, 1, S)
        assert bool(jnp.allclose(out, out_ref, atol=2e-2, rtol=2e-2)), f"out mismatch (layer={layer})"
        assert bool(jnp.allclose(attn, attn_ref, atol=2e-2, rtol=2e-2)), f"attn mismatch (layer={layer})"

    print("KERNEL_OK")
</pallas_src>

<mosaic_0001>
module attributes {stable_mosaic.version = 11 : i64} {
  func.func @_mhsa_kernel(%arg0: i32, %arg1: memref<1x16x64xf32, #tpu.memory_space<vmem>>, %arg2: memref<1x16x64xf32, #tpu.memory_space<vmem>>, %arg3: memref<1x16x64xf32, #tpu.memory_space<vmem>>, %arg4: memref<64x64xf32, #tpu.memory_space<vmem>>, %arg5: memref<64x64xf32, #tpu.memory_space<vmem>>, %arg6: memref<64x64xf32, #tpu.memory_space<vmem>>, %arg7: memref<3x64xf32, #tpu.memory_space<vmem>>, %arg8: memref<64x48xf32, #tpu.memory_space<vmem>>, %arg9: memref<384x48xf32, #tpu.memory_space<vmem>>, %arg10: memref<48x384xf32, #tpu.memory_space<vmem>>, %arg11: memref<48x48xf32, #tpu.memory_space<vmem>>, %arg12: memref<384x64xf32, #tpu.memory_space<vmem>>, %arg13: memref<1x16x64xf32, #tpu.memory_space<vmem>>, %arg14: memref<1x16x48xf32, #tpu.memory_space<vmem>>) attributes {dimension_semantics = [#tpu.dimension_semantics<parallel>], iteration_bounds = array<i64: 2>, scalar_prefetch = 0 : i64, scratch_operands = 0 : i64, tpu.core_type = #tpu.core_type<tc>, window_params = [{transform_indices = @transform_0, window_bounds = array<i64: 1, 16, 64>}, {transform_indices = @transform_1, window_bounds = array<i64: 1, 16, 64>}, {transform_indices = @transform_2, window_bounds = array<i64: 1, 16, 64>}, {pipeline_mode = #tpu.pipeline_mode<synchronous>, transform_indices = @transform_3, window_bounds = array<i64: 64, 64>}, {pipeline_mode = #tpu.pipeline_mode<synchronous>, transform_indices = @transform_4, window_bounds = array<i64: 64, 64>}, {pipeline_mode = #tpu.pipeline_mode<synchronous>, transform_indices = @transform_5, window_bounds = array<i64: 64, 64>}, {pipeline_mode = #tpu.pipeline_mode<synchronous>, transform_indices = @transform_6, window_bounds = array<i64: 3, 64>}, {pipeline_mode = #tpu.pipeline_mode<synchronous>, transform_indices = @transform_7, window_bounds = array<i64: 64, 48>}, {pipeline_mode = #tpu.pipeline_mode<synchronous>, transform_indices = @transform_8, window_bounds = array<i64: 384, 48>}, {pipeline_mode = #tpu.pipeline_mode<synchronous>, transform_indices = @transform_9, window_bounds = array<i64: 48, 384>}, {pipeline_mode = #tpu.pipeline_mode<synchronous>, transform_indices = @transform_10, window_bounds = array<i64: 48, 48>}, {pipeline_mode = #tpu.pipeline_mode<synchronous>, transform_indices = @transform_11, window_bounds = array<i64: 384, 64>}, {transform_indices = @transform_12, window_bounds = array<i64: 1, 16, 64>}, {transform_indices = @transform_13, window_bounds = array<i64: 1, 16, 48>}]} {
    %c0 = arith.constant 0 : index
    %c0_0 = arith.constant 0 : index
    %c0_1 = arith.constant 0 : index
    %0 = vector.load %arg1[%c0, %c0_0, %c0_1] : memref<1x16x64xf32, #tpu.memory_space<vmem>>, vector<1x16x64xf32>
    %1 = vector.shape_cast %0 : vector<1x16x64xf32> to vector<16x64xf32>
    %c0_2 = arith.constant 0 : index
    %c0_3 = arith.constant 0 : index
    %c0_4 = arith.constant 0 : index
    %2 = vector.load %arg2[%c0_2, %c0_3, %c0_4] : memref<1x16x64xf32, #tpu.memory_space<vmem>>, vector<1x16x64xf32>
    %3 = vector.shape_cast %2 : vector<1x16x64xf32> to vector<16x64xf32>
    %c0_5 = arith.constant 0 : index
    %c0_6 = arith.constant 0 : index
    %c0_7 = arith.constant 0 : index
    %4 = vector.load %arg3[%c0_5, %c0_6, %c0_7] : memref<1x16x64xf32, #tpu.memory_space<vmem>>, vector<1x16x64xf32>
    %5 = vector.shape_cast %4 : vector<1x16x64xf32> to vector<16x64xf32>
    %c0_8 = arith.constant 0 : index
    %c0_9 = arith.constant 0 : index
    %6 = vector.load %arg4[%c0_8, %c0_9] : memref<64x64xf32, #tpu.memory_space<vmem>>, vector<64x64xf32>
    %cst = arith.constant dense<0.000000e+00> : vector<16x64xf32>
    %7 = tpu.matmul %1, %6, %cst {dimension_numbers = #tpu.dot_dimension_numbers<[1], [0], [0], [1], [0, 0, 1, 1], [], []>} : vector<16x64xf32>, vector<64x64xf32>, vector<16x64xf32> -> vector<16x64xf32>
    %c0_10 = arith.constant 0 : index
    %c0_11 = arith.constant 0 : index
    %8 = vector.load %arg7[%c0_10, %c0_11] : memref<3x64xf32, #tpu.memory_space<vmem>>, vector<1x64xf32>
    %9 = vector.broadcast %8 : vector<1x64xf32> to vector<16x64xf32>
    %10 = arith.addf %7, %9 : vector<16x64xf32>
    %c0_12 = arith.constant 0 : index
    %c0_13 = arith.constant 0 : index
    %11 = vector.load %arg5[%c0_12, %c0_13] : memref<64x64xf32, #tpu.memory_space<vmem>>, vector<64x64xf32>
    %cst_14 = arith.constant dense<0.000000e+00> : vector<16x64xf32>
    %12 = tpu.matmul %3, %11, %cst_14 {dimension_numbers = #tpu.dot_dimension_numbers<[1], [0], [0], [1], [0, 0, 1, 1], [], []>} : vector<16x64xf32>, vector<64x64xf32>, vector<16x64xf32> -> vector<16x64xf32>
    %c1 = arith.constant 1 : index
    %c0_15 = arith.constant 0 : index
    %13 = vector.load %arg7[%c1, %c0_15] : memref<3x64xf32, #tpu.memory_space<vmem>>, vector<1x64xf32>
    %14 = vector.broadcast %13 : vector<1x64xf32> to vector<16x64xf32>
    %15 = arith.addf %12, %14 : vector<16x64xf32>
    %c0_16 = arith.constant 0 : index
    %c0_17 = arith.constant 0 : index
    %16 = vector.load %arg6[%c0_16, %c0_17] : memref<64x64xf32, #tpu.memory_space<vmem>>, vector<64x64xf32>
    %cst_18 = arith.constant dense<0.000000e+00> : vector<16x64xf32>
    %17 = tpu.matmul %5, %16, %cst_18 {dimension_numbers = #tpu.dot_dimension_numbers<[1], [0], [0], [1], [0, 0, 1, 1], [], []>} : vector<16x64xf32>, vector<64x64xf32>, vector<16x64xf32> -> vector<16x64xf32>
    %c2 = arith.constant 2 : index
    %c0_19 = arith.constant 0 : index
    %18 = vector.load %arg7[%c2, %c0_19] : memref<3x64xf32, #tpu.memory_space<vmem>>, vector<1x64xf32>
    %19 = vector.broadcast %18 : vector<1x64xf32> to vector<16x64xf32>
    %20 = arith.addf %17, %19 : vector<16x64xf32>
    %cst_20 = arith.constant 0.000000e+00 : f32
    %21 = vector.broadcast %cst_20 : f32 to vector<4x64xf32>
    %22 = tpu.concatenate %15, %21, %15 in 0 : vector<16x64xf32>, vector<4x64xf32>, vector<16x64xf32> -> vector<36x64xf32>
    %23 = tpu.concatenate %20, %21, %20 in 0 : vector<16x64xf32>, vector<4x64xf32>, vector<16x64xf32> -> vector<36x64xf32>
    %24 = vector.extract_strided_slice %22 {offsets = [1, 0], sizes = [16, 64], strides = [1, 1]} : vector<36x64xf32> to vector<16x64xf32>
    %25 = vector.extract_strided_slice %23 {offsets = [1, 0], sizes = [16, 64], strides = [1, 1]} : vector<36x64xf32> to vector<16x64xf32>
    %26 = arith.mulf %10, %24 : vector<16x64xf32>
    %27 = vector.extract_strided_slice %22 {offsets = [20, 0], sizes = [16, 64], strides = [1, 1]} : vector<36x64xf32> to vector<16x64xf32>
    %28 = vector.extract_strided_slice %23 {offsets = [20, 0], sizes = [16, 64], strides = [1, 1]} : vector<36x64xf32> to vector<16x64xf32>
    %29 = arith.mulf %10, %27 : vector<16x64xf32>
    %30 = vector.extract_strided_slice %22 {offsets = [19, 0], sizes = [16, 64], strides = [1, 1]} : vector<36x64xf32> to vector<16x64xf32>
    %31 = vector.extract_strided_slice %23 {offsets = [19, 0], sizes = [16, 64], strides = [1, 1]} : vector<36x64xf32> to vector<16x64xf32>
    %32 = arith.mulf %10, %30 : vector<16x64xf32>
    %33 = vector.extract_strided_slice %22 {offsets = [18, 0], sizes = [16, 64], strides = [1, 1]} : vector<36x64xf32> to vector<16x64xf32>
    %34 = vector.extract_strided_slice %23 {offsets = [18, 0], sizes = [16, 64], strides = [1, 1]} : vector<36x64xf32> to vector<16x64xf32>
    %35 = arith.mulf %10, %33 : vector<16x64xf32>
    %36 = vector.extract_strided_slice %22 {offsets = [17, 0], sizes = [16, 64], strides = [1, 1]} : vector<36x64xf32> to vector<16x64xf32>
    %37 = vector.extract_strided_slice %23 {offsets = [17, 0], sizes = [16, 64], strides = [1, 1]} : vector<36x64xf32> to vector<16x64xf32>
    %38 = arith.mulf %10, %36 : vector<16x64xf32>
    %39 = vector.extract_strided_slice %22 {offsets = [16, 0], sizes = [16, 64], strides = [1, 1]} : vector<36x64xf32> to vector<16x64xf32>
    %40 = vector.extract_strided_slice %23 {offsets = [16, 0], sizes = [16, 64], strides = [1, 1]} : vector<36x64xf32> to vector<16x64xf32>
    %41 = arith.mulf %10, %39 : vector<16x64xf32>
    %42 = tpu.concatenate %26, %29, %32, %35, %38, %41 in 1 : vector<16x64xf32>, vector<16x64xf32>, vector<16x64xf32>, vector<16x64xf32>, vector<16x64xf32>, vector<16x64xf32> -> vector<16x384xf32>
    %43 = tpu.concatenate %25, %28, %31, %34, %37, %40 in 1 : vector<16x64xf32>, vector<16x64xf32>, vector<16x64xf32>, vector<16x64xf32>, vector<16x64xf32>, vector<16x64xf32> -> vector<16x384xf32>
    %c0_21 = arith.constant 0 : index
    %c0_22 = arith.constant 0 : index
    %44 = vector.load %arg9[%c0_21, %c0_22] : memref<384x48xf32, #tpu.memory_space<vmem>>, vector<384x48xf32>
    %cst_23 = arith.constant dense<0.000000e+00> : vector<16x48xf32>
    %45 = tpu.matmul %42, %44, %cst_23 {dimension_numbers = #tpu.dot_dimension_numbers<[1], [0], [0], [1], [0, 0, 1, 1], [], []>} : vector<16x384xf32>, vector<384x48xf32>, vector<16x48xf32> -> vector<16x48xf32>
    %c0_24 = arith.constant 0 : index
    %c0_25 = arith.constant 0 : index
    %46 = vector.load %arg8[%c0_24, %c0_25] : memref<64x48xf32, #tpu.memory_space<vmem>>, vector<64x48xf32>
    %cst_26 = arith.constant dense<0.000000e+00> : vector<16x48xf32>
    %47 = tpu.matmul %10, %46, %cst_26 {dimension_numbers = #tpu.dot_dimension_numbers<[1], [0], [0], [1], [0, 0, 1, 1], [], []>} : vector<16x64xf32>, vector<64x48xf32>, vector<16x48xf32> -> vector<16x48xf32>
    %cst_27 = arith.constant 0.000000e+00 : f32
    %48 = vector.broadcast %cst_27 : f32 to vector<16x48xf32>
    %49 = arith.cmpf oeq, %45, %48 : vector<16x48xf32>
    %cst_28 = arith.constant 9.99999971E-10 : f32
    %cst_29 = arith.constant 0.000000e+00 : f32
    %50 = vector.broadcast %cst_28 : f32 to vector<16x48xf32>
    %51 = vector.broadcast %cst_29 : f32 to vector<16x48xf32>
    %52 = arith.select %49, %50, %51 : vector<16x48xi1>, vector<16x48xf32>
    %53 = arith.addf %45, %47 : vector<16x48xf32>
    %cst_30 = arith.constant 0.353553385 : f32
    %54 = vector.broadcast %cst_30 : f32 to vector<16x48xf32>
    %55 = arith.mulf %53, %54 : vector<16x48xf32>
    %56 = arith.addf %55, %52 : vector<16x48xf32>
    %cst_31 = arith.constant dense<0xFF800000> : vector<16xf32>
    %57 = vector.multi_reduction <maximumf>, %56, %cst_31 [1] : vector<16x48xf32> to vector<16xf32>
    %58 = vector.shape_cast %57 : vector<16xf32> to vector<16x1xf32>
    %59 = vector.broadcast %58 : vector<16x1xf32> to vector<16x48xf32>
    %60 = arith.subf %56, %59 : vector<16x48xf32>
    %61 = math.exp %60 : vector<16x48xf32>
    %c0_32 = arith.constant 0 : index
    %c0_33 = arith.constant 0 : index
    %62 = vector.load %arg11[%c0_32, %c0_33] : memref<48x48xf32, #tpu.memory_space<vmem>>, vector<48x48xf32>
    %cst_34 = arith.constant dense<0.000000e+00> : vector<16x48xf32>
    %63 = tpu.matmul %61, %62, %cst_34 {dimension_numbers = #tpu.dot_dimension_numbers<[1], [0], [0], [1], [0, 0, 1, 1], [], []>} : vector<16x48xf32>, vector<48x48xf32>, vector<16x48xf32> -> vector<16x48xf32>
    %64 = arith.divf %61, %63 : vector<16x48xf32>
    %c0_35 = arith.constant 0 : index
    %c0_36 = arith.constant 0 : index
    %65 = vector.load %arg10[%c0_35, %c0_36] : memref<48x384xf32, #tpu.memory_space<vmem>>, vector<48x384xf32>
    %cst_37 = arith.constant dense<0.000000e+00> : vector<16x384xf32>
    %66 = tpu.matmul %64, %65, %cst_37 {dimension_numbers = #tpu.dot_dimension_numbers<[1], [0], [0], [1], [0, 0, 1, 1], [], []>} : vector<16x48xf32>, vector<48x384xf32>, vector<16x384xf32> -> vector<16x384xf32>
    %67 = arith.mulf %66, %43 : vector<16x384xf32>
    %c0_38 = arith.constant 0 : index
    %c0_39 = arith.constant 0 : index
    %68 = vector.load %arg12[%c0_38, %c0_39] : memref<384x64xf32, #tpu.memory_space<vmem>>, vector<384x64xf32>
    %cst_40 = arith.constant dense<0.000000e+00> : vector<16x64xf32>
    %69 = tpu.matmul %67, %68, %cst_40 {dimension_numbers = #tpu.dot_dimension_numbers<[1], [0], [0], [1], [0, 0, 1, 1], [], []>} : vector<16x384xf32>, vector<384x64xf32>, vector<16x64xf32> -> vector<16x64xf32>
    %c0_41 = arith.constant 0 : index
    %c0_42 = arith.constant 0 : index
    %c0_43 = arith.constant 0 : index
    %70 = vector.load %arg13[%c0_41, %c0_42, %c0_43] : memref<1x16x64xf32, #tpu.memory_space<vmem>>, vector<1x16x64xf32>
    %71 = vector.shape_cast %70 : vector<1x16x64xf32> to vector<16x64xf32>
    %72 = vector.shape_cast %69 : vector<16x64xf32> to vector<1x16x64xf32>
    tpu.vector_store %arg13[%c0_41, %c0_42, %c0_43], %72 {strides = array<i32>} : memref<1x16x64xf32, #tpu.memory_space<vmem>>, vector<1x16x64xf32>,
    %c0_44 = arith.constant 0 : index
    %c0_45 = arith.constant 0 : index
    %c0_46 = arith.constant 0 : index
    %73 = vector.load %arg14[%c0_44, %c0_45, %c0_46] : memref<1x16x48xf32, #tpu.memory_space<vmem>>, vector<1x16x48xf32>
    %74 = vector.shape_cast %73 : vector<1x16x48xf32> to vector<16x48xf32>
    %75 = vector.shape_cast %64 : vector<16x48xf32> to vector<1x16x48xf32>
    tpu.vector_store %arg14[%c0_44, %c0_45, %c0_46], %75 {strides = array<i32>} : memref<1x16x48xf32, #tpu.memory_space<vmem>>, vector<1x16x48xf32>,
    return
  }
  func.func @transform_0(%arg0: i32) -> (i32, i32, i32) {
    %c0_i32 = arith.constant 0 : i32
    %c0_i32_0 = arith.constant 0 : i32
    %c0_i32_1 = arith.constant 0 : i32
    return %arg0, %c0_i32, %c0_i32_0 : i32, i32, i32
  }
  func.func @transform_1(%arg0: i32) -> (i32, i32, i32) {
    %c0_i32 = arith.constant 0 : i32
    %c0_i32_0 = arith.constant 0 : i32
    %c0_i32_1 = arith.constant 0 : i32
    return %arg0, %c0_i32, %c0_i32_0 : i32, i32, i32
  }
  func.func @transform_2(%arg0: i32) -> (i32, i32, i32) {
    %c0_i32 = arith.constant 0 : i32
    %c0_i32_0 = arith.constant 0 : i32
    %c0_i32_1 = arith.constant 0 : i32
    return %arg0, %c0_i32, %c0_i32_0 : i32, i32, i32
  }
  func.func @transform_3(%arg0: i32) -> (i32, i32) {
    %c0_i32 = arith.constant 0 : i32
    %c0_i32_0 = arith.constant 0 : i32
    %c0_i32_1 = arith.constant 0 : i32
    return %c0_i32, %c0_i32_0 : i32, i32
  }
  func.func @transform_4(%arg0: i32) -> (i32, i32) {
    %c0_i32 = arith.constant 0 : i32
    %c0_i32_0 = arith.constant 0 : i32
    %c0_i32_1 = arith.constant 0 : i32
    return %c0_i32, %c0_i32_0 : i32, i32
  }
  func.func @transform_5(%arg0: i32) -> (i32, i32) {
    %c0_i32 = arith.constant 0 : i32
    %c0_i32_0 = arith.constant 0 : i32
    %c0_i32_1 = arith.constant 0 : i32
    return %c0_i32, %c0_i32_0 : i32, i32
  }
  func.func @transform_6(%arg0: i32) -> (i32, i32) {
    %c0_i32 = arith.constant 0 : i32
    %c0_i32_0 = arith.constant 0 : i32
    %c0_i32_1 = arith.constant 0 : i32
    return %c0_i32, %c0_i32_0 : i32, i32
  }
  func.func @transform_7(%arg0: i32) -> (i32, i32) {
    %c0_i32 = arith.constant 0 : i32
    %c0_i32_0 = arith.constant 0 : i32
    %c0_i32_1 = arith.constant 0 : i32
    return %c0_i32, %c0_i32_0 : i32, i32
  }
  func.func @transform_8(%arg0: i32) -> (i32, i32) {
    %c0_i32 = arith.constant 0 : i32
    %c0_i32_0 = arith.constant 0 : i32
    %c0_i32_1 = arith.constant 0 : i32
    return %c0_i32, %c0_i32_0 : i32, i32
  }
  func.func @transform_9(%arg0: i32) -> (i32, i32) {
    %c0_i32 = arith.constant 0 : i32
    %c0_i32_0 = arith.constant 0 : i32
    %c0_i32_1 = arith.constant 0 : i32
    return %c0_i32, %c0_i32_0 : i32, i32
  }
  func.func @transform_10(%arg0: i32) -> (i32, i32) {
    %c0_i32 = arith.constant 0 : i32
    %c0_i32_0 = arith.constant 0 : i32
    %c0_i32_1 = arith.constant 0 : i32
    return %c0_i32, %c0_i32_0 : i32, i32
  }
  func.func @transform_11(%arg0: i32) -> (i32, i32) {
    %c0_i32 = arith.constant 0 : i32
    %c0_i32_0 = arith.constant 0 : i32
    %c0_i32_1 = arith.constant 0 : i32
    return %c0_i32, %c0_i32_0 : i32, i32
  }
  func.func @transform_12(%arg0: i32) -> (i32, i32, i32) {
    %c0_i32 = arith.constant 0 : i32
    %c0_i32_0 = arith.constant 0 : i32
    %c0_i32_1 = arith.constant 0 : i32
    return %arg0, %c0_i32, %c0_i32_0 : i32, i32, i32
  }
  func.func @transform_13(%arg0: i32) -> (i32, i32, i32) {
    %c0_i32 = arith.constant 0 : i32
    %c0_i32_0 = arith.constant 0 : i32
    %c0_i32_1 = arith.constant 0 : i32
    return %arg0, %c0_i32, %c0_i32_0 : i32, i32, i32
  }
}

</mosaic_0001>

<llo_original>
// kernel: tpu_custom_call.1
$region0: #{tpu_custom_call.1}
  #allocation0 [shape = 'u32[]', space=smem, size = 0x4, offset = 0x4, fixed_abs, tag = 'smem constant byte address 0x4 - core index']
  #allocation1 [shape = 'u32[144,128]{1,0:T(1,128)}', space=vmem, size = 0x12000, scoped, tag = 'internal scratch']
  %s0 = inlined_call_operand.vmem [shape: f32[2,16,64], index: 0, kind: input, shape index: {}]
  %s1 = inlined_call_operand.vmem [shape: f32[2,16,64], index: 1, kind: input, shape index: {}]
  %s2 = inlined_call_operand.vmem [shape: f32[2,16,64], index: 2, kind: input, shape index: {}]
  %s3 = inlined_call_operand.vmem [shape: f32[64,64], index: 3, kind: input, shape index: {}]
  %s4 = inlined_call_operand.vmem [shape: f32[64,64], index: 4, kind: input, shape index: {}]
  %s5 = inlined_call_operand.vmem [shape: f32[64,64], index: 5, kind: input, shape index: {}]
  %s6 = inlined_call_operand.vmem [shape: f32[3,64], index: 6, kind: input, shape index: {}]
  %s7 = inlined_call_operand.vmem [shape: f32[64,48], index: 7, kind: input, shape index: {}]
  %s8 = inlined_call_operand.vmem [shape: f32[384,48], index: 8, kind: input, shape index: {}]
  %s9 = inlined_call_operand.vmem [shape: f32[48,384], index: 9, kind: input, shape index: {}]
  %s10 = inlined_call_operand.vmem [shape: f32[48,48], index: 10, kind: input, shape index: {}]
  %s11 = inlined_call_operand.vmem [shape: f32[384,64], index: 11, kind: input, shape index: {}]
  %s12 = inlined_call_operand.hbm [shape: f32[2,16,64], index: 12, kind: output, shape index: {0}]
  %s13 = inlined_call_operand.hbm [shape: f32[2,16,48], index: 13, kind: output, shape index: {1}]
  %14 = xla_tuple %s12, %s13
  %s15 = sld [smem:[#allocation0]]
  $region89: #{tpu_custom_call.1} parent=0
    _
  %s17 = ssub.s32 1, %s15
  %s18 = scalar_select 0, %s17, %s15
  $region1: #{tpu_custom_call.1} parent=0
    #allocation2 [shape = 'u8[16384]{0}', space=vmem, size = 0x4000, scoped, tag = 'output window, operand 0']
    #allocation3 [shape = 's32[2]{0}', space=sflag, size = 0x8, scoped, tag = 'scoped memory for tpu_custom_call.1']
    #allocation4 [shape = 'u8[16384]{0}', space=vmem, size = 0x4000, scoped, tag = 'output window, operand 1']
    #allocation5 [shape = 's32[2]{0}', space=sflag, size = 0x8, scoped, tag = 'scoped memory for tpu_custom_call.1']
    %19 = vsyncpa [#allocation3], 0
    %s20 = scalar_lea.sflag [#allocation3], 1
    %21 = vsyncpa %s20, 0
    %22 = vsyncpa [#allocation5], 0
    %s23 = scalar_lea.sflag [#allocation5], 1
    %24 = vsyncpa %s23, 0
    loop: start=0, step=1, limit=4
    $region2: #{tpu_custom_call.1} parent=1 // loop_pre_header
      _
    $region3: #{tpu_custom_call.1} parent=1 // loop_header
      %s26 = sphi 0, %s30
      %p27 = scmp.ge.s32.totalorder %s26, 4
      %s36 = sphi 0, %s38
      %s39 = sphi 0, %s36
      %s40 = sphi 0, %s39
      %s56 = sphi 0, %s40
      %s62 = sphi 0, %s64
      %s65 = sphi 0, %s62
      %s66 = sphi 0, %s65
      %s82 = sphi 0, %s66
      %s88 = sphi 0, %s90
      %s91 = sphi 0, %s88
      %s92 = sphi 0, %s91
      %s108 = sphi 0, %s92
      %s112 = sphi 0, %s112
      %s114 = sphi 0, %s112
      %s115 = sphi 0, %s114
      %s129 = sphi 0, %s115
      %s133 = sphi 0, %s133
      %s135 = sphi 0, %s133
      %s136 = sphi 0, %s135
      %s150 = sphi 0, %s136
      %s154 = sphi 0, %s154
      %s156 = sphi 0, %s154
      %s157 = sphi 0, %s156
      %s171 = sphi 0, %s157
      %s175 = sphi 0, %s175
      %s177 = sphi 0, %s175
      %s178 = sphi 0, %s177
      %s192 = sphi 0, %s178
      %s196 = sphi 0, %s196
      %s198 = sphi 0, %s196
      %s199 = sphi 0, %s198
      %s213 = sphi 0, %s199
      %s217 = sphi 0, %s217
      %s219 = sphi 0, %s217
      %s220 = sphi 0, %s219
      %s234 = sphi 0, %s220
      %s238 = sphi 0, %s238
      %s240 = sphi 0, %s238
      %s241 = sphi 0, %s240
      %s255 = sphi 0, %s241
      %s259 = sphi 0, %s259
      %s261 = sphi 0, %s259
      %s262 = sphi 0, %s261
      %s276 = sphi 0, %s262
      %s280 = sphi 0, %s280
      %s282 = sphi 0, %s280
      %s283 = sphi 0, %s282
      %s297 = sphi 0, %s283
      %s303 = sphi 0, %s305
      %s306 = sphi 0, %s303
      %s307 = sphi 0, %s306
      %s323 = sphi 0, %s307
      %s329 = sphi 0, %s331
      %s332 = sphi 0, %s329
      %s333 = sphi 0, %s332
      %s349 = sphi 0, %s333
    $region4: #{tpu_custom_call.1} parent=1 // loop_header_branch
      %29 = sbr.rel (%p27) target = $region8
    $region5: #{tpu_custom_call.1} parent=1 // loop_body
      %s31 = ssub.s32 %s26, 1
      %s32 = ssub.s32 %s26, 2
      %s33 = sadd.s32 %s26, 1
      %s34 = ssub.s32 %s26, %s33
      %p35 = scmp.eq.s32.totalorder %s34, 0
      %s37 = sadd.s32 %s36, 1
      %s38 = scalar_select %p35, %s36, %s37
      %p41 = pneg %p35
      %p42 = scmp.eq.s32.totalorder %s26, 1
      %p43 = por %p41, %p42
      %p44 = scmp.ne.s32.totalorder %s36, %s39
      %p45 = scmp.eq.s32.totalorder %s26, 0
      %p46 = por %p44, %p45
      %p47 = scmp.ne.s32.totalorder %s36, %s39
      %p48 = scmp.eq.s32.totalorder %s31, 1
      %p49 = por %p47, %p48
      %p50 = scmp.ne.s32.totalorder %s39, %s40
      %p51 = scmp.eq.s32.totalorder %s31, 0
      %p52 = por %p50, %p51
      %p53 = scmp.ne.s32.totalorder %s39, %s40
      %p54 = scmp.eq.s32.totalorder %s32, 1
      %p55 = por %p53, %p54
      %p57 = scmp.ne.s32.totalorder %s40, %s56
      %p58 = scmp.eq.s32.totalorder %s32, 0
      %p59 = por %p57, %p58
      %s60 = ssub.s32 %s26, %s33
      %p61 = scmp.eq.s32.totalorder %s60, 0
      %s63 = sadd.s32 %s62, 1
      %s64 = scalar_select %p61, %s62, %s63
      %p67 = pneg %p61
      %p68 = scmp.eq.s32.totalorder %s26, 1
      %p69 = por %p67, %p68
      %p70 = scmp.ne.s32.totalorder %s62, %s65
      %p71 = scmp.eq.s32.totalorder %s26, 0
      %p72 = por %p70, %p71
      %p73 = scmp.ne.s32.totalorder %s62, %s65
      %p74 = scmp.eq.s32.totalorder %s31, 1
      %p75 = por %p73, %p74
      %p76 = scmp.ne.s32.totalorder %s65, %s66
      %p77 = scmp.eq.s32.totalorder %s31, 0
      %p78 = por %p76, %p77
      %p79 = scmp.ne.s32.totalorder %s65, %s66
      %p80 = scmp.eq.s32.totalorder %s32, 1
      %p81 = por %p79, %p80
      %p83 = scmp.ne.s32.totalorder %s66, %s82
      %p84 = scmp.eq.s32.totalorder %s32, 0
      %p85 = por %p83, %p84
      %s86 = ssub.s32 %s26, %s33
      %p87 = scmp.eq.s32.totalorder %s86, 0
      %s89 = sadd.s32 %s88, 1
      %s90 = scalar_select %p87, %s88, %s89
      %p93 = pneg %p87
      %p94 = scmp.eq.s32.totalorder %s26, 1
      %p95 = por %p93, %p94
      %p96 = scmp.ne.s32.totalorder %s88, %s91
      %p97 = scmp.eq.s32.totalorder %s26, 0
      %p98 = por %p96, %p97
      %p99 = scmp.ne.s32.totalorder %s88, %s91
      %p100 = scmp.eq.s32.totalorder %s31, 1
      %p101 = por %p99, %p100
      %p102 = scmp.ne.s32.totalorder %s91, %s92
      %p103 = scmp.eq.s32.totalorder %s31, 0
      %p104 = por %p102, %p103
      %p105 = scmp.ne.s32.totalorder %s91, %s92
      %p106 = scmp.eq.s32.totalorder %s32, 1
      %p107 = por %p105, %p106
      %p109 = scmp.ne.s32.totalorder %s92, %s108
      %p110 = scmp.eq.s32.totalorder %s32, 0
      %p111 = por %p109, %p110
      %s113 = sadd.s32 %s112, 1
      %p116 = scmp.eq.s32.totalorder %s26, 1
      %p117 = scmp.ne.s32.totalorder %s112, %s114
      %p118 = scmp.eq.s32.totalorder %s26, 0
      %p119 = por %p117, %p118
      %p120 = scmp.ne.s32.totalorder %s112, %s114
      %p121 = scmp.eq.s32.totalorder %s31, 1
      %p122 = por %p120, %p121
      %p123 = scmp.ne.s32.totalorder %s114, %s115
      %p124 = scmp.eq.s32.totalorder %s31, 0
      %p125 = por %p123, %p124
      %p126 = scmp.ne.s32.totalorder %s114, %s115
      %p127 = scmp.eq.s32.totalorder %s32, 1
      %p128 = por %p126, %p127
      %p130 = scmp.ne.s32.totalorder %s115, %s129
      %p131 = scmp.eq.s32.totalorder %s32, 0
      %p132 = por %p130, %p131
      %s134 = sadd.s32 %s133, 1
      %p137 = scmp.eq.s32.totalorder %s26, 1
      %p138 = scmp.ne.s32.totalorder %s133, %s135
      %p139 = scmp.eq.s32.totalorder %s26, 0
      %p140 = por %p138, %p139
      %p141 = scmp.ne.s32.totalorder %s133, %s135
      %p142 = scmp.eq.s32.totalorder %s31, 1
      %p143 = por %p141, %p142
      %p144 = scmp.ne.s32.totalorder %s135, %s136
      %p145 = scmp.eq.s32.totalorder %s31, 0
      %p146 = por %p144, %p145
      %p147 = scmp.ne.s32.totalorder %s135, %s136
      %p148 = scmp.eq.s32.totalorder %s32, 1
      %p149 = por %p147, %p148
      %p151 = scmp.ne.s32.totalorder %s136, %s150
      %p152 = scmp.eq.s32.totalorder %s32, 0
      %p153 = por %p151, %p152
      %s155 = sadd.s32 %s154, 1
      %p158 = scmp.eq.s32.totalorder %s26, 1
      %p159 = scmp.ne.s32.totalorder %s154, %s156
      %p160 = scmp.eq.s32.totalorder %s26, 0
      %p161 = por %p159, %p160
      %p162 = scmp.ne.s32.totalorder %s154, %s156
      %p163 = scmp.eq.s32.totalorder %s31, 1
      %p164 = por %p162, %p163
      %p165 = scmp.ne.s32.totalorder %s156, %s157
      %p166 = scmp.eq.s32.totalorder %s31, 0
      %p167 = por %p165, %p166
      %p168 = scmp.ne.s32.totalorder %s156, %s157
      %p169 = scmp.eq.s32.totalorder %s32, 1
      %p170 = por %p168, %p169
      %p172 = scmp.ne.s32.totalorder %s157, %s171
      %p173 = scmp.eq.s32.totalorder %s32, 0
      %p174 = por %p172, %p173
      %s176 = sadd.s32 %s175, 1
      %p179 = scmp.eq.s32.totalorder %s26, 1
      %p180 = scmp.ne.s32.totalorder %s175, %s177
      %p181 = scmp.eq.s32.totalorder %s26, 0
      %p182 = por %p180, %p181
      %p183 = scmp.ne.s32.totalorder %s175, %s177
      %p184 = scmp.eq.s32.totalorder %s31, 1
      %p185 = por %p183, %p184
      %p186 = scmp.ne.s32.totalorder %s177, %s178
      %p187 = scmp.eq.s32.totalorder %s31, 0
      %p188 = por %p186, %p187
      %p189 = scmp.ne.s32.totalorder %s177, %s178
      %p190 = scmp.eq.s32.totalorder %s32, 1
      %p191 = por %p189, %p190
      %p193 = scmp.ne.s32.totalorder %s178, %s192
      %p194 = scmp.eq.s32.totalorder %s32, 0
      %p195 = por %p193, %p194
      %s197 = sadd.s32 %s196, 1
      %p200 = scmp.eq.s32.totalorder %s26, 1
      %p201 = scmp.ne.s32.totalorder %s196, %s198
      %p202 = scmp.eq.s32.totalorder %s26, 0
      %p203 = por %p201, %p202
      %p204 = scmp.ne.s32.totalorder %s196, %s198
      %p205 = scmp.eq.s32.totalorder %s31, 1
      %p206 = por %p204, %p205
      %p207 = scmp.ne.s32.totalorder %s198, %s199
      %p208 = scmp.eq.s32.totalorder %s31, 0
      %p209 = por %p207, %p208
      %p210 = scmp.ne.s32.totalorder %s198, %s199
      %p211 = scmp.eq.s32.totalorder %s32, 1
      %p212 = por %p210, %p211
      %p214 = scmp.ne.s32.totalorder %s199, %s213
      %p215 = scmp.eq.s32.totalorder %s32, 0
      %p216 = por %p214, %p215
      %s218 = sadd.s32 %s217, 1
      %p221 = scmp.eq.s32.totalorder %s26, 1
      %p222 = scmp.ne.s32.totalorder %s217, %s219
      %p223 = scmp.eq.s32.totalorder %s26, 0
      %p224 = por %p222, %p223
      %p225 = scmp.ne.s32.totalorder %s217, %s219
      %p226 = scmp.eq.s32.totalorder %s31, 1
      %p227 = por %p225, %p226
      %p228 = scmp.ne.s32.totalorder %s219, %s220
      %p229 = scmp.eq.s32.totalorder %s31, 0
      %p230 = por %p228, %p229
      %p231 = scmp.ne.s32.totalorder %s219, %s220
      %p232 = scmp.eq.s32.totalorder %s32, 1
      %p233 = por %p231, %p232
      %p235 = scmp.ne.s32.totalorder %s220, %s234
      %p236 = scmp.eq.s32.totalorder %s32, 0
      %p237 = por %p235, %p236
      %s239 = sadd.s32 %s238, 1
      %p242 = scmp.eq.s32.totalorder %s26, 1
      %p243 = scmp.ne.s32.totalorder %s238, %s240
      %p244 = scmp.eq.s32.totalorder %s26, 0
      %p245 = por %p243, %p244
      %p246 = scmp.ne.s32.totalorder %s238, %s240
      %p247 = scmp.eq.s32.totalorder %s31, 1
      %p248 = por %p246, %p247
      %p249 = scmp.ne.s32.totalorder %s240, %s241
      %p250 = scmp.eq.s32.totalorder %s31, 0
      %p251 = por %p249, %p250
      %p252 = scmp.ne.s32.totalorder %s240, %s241
      %p253 = scmp.eq.s32.totalorder %s32, 1
      %p254 = por %p252, %p253
      %p256 = scmp.ne.s32.totalorder %s241, %s255
      %p257 = scmp.eq.s32.totalorder %s32, 0
      %p258 = por %p256, %p257
      %s260 = sadd.s32 %s259, 1
      %p263 = scmp.eq.s32.totalorder %s26, 1
      %p264 = scmp.ne.s32.totalorder %s259, %s261
      %p265 = scmp.eq.s32.totalorder %s26, 0
      %p266 = por %p264, %p265
      %p267 = scmp.ne.s32.totalorder %s259, %s261
      %p268 = scmp.eq.s32.totalorder %s31, 1
      %p269 = por %p267, %p268
      %p270 = scmp.ne.s32.totalorder %s261, %s262
      %p271 = scmp.eq.s32.totalorder %s31, 0
      %p272 = por %p270, %p271
      %p273 = scmp.ne.s32.totalorder %s261, %s262
      %p274 = scmp.eq.s32.totalorder %s32, 1
      %p275 = por %p273, %p274
      %p277 = scmp.ne.s32.totalorder %s262, %s276
      %p278 = scmp.eq.s32.totalorder %s32, 0
      %p279 = por %p277, %p278
      %s281 = sadd.s32 %s280, 1
      %p284 = scmp.eq.s32.totalorder %s26, 1
      %p285 = scmp.ne.s32.totalorder %s280, %s282
      %p286 = scmp.eq.s32.totalorder %s26, 0
      %p287 = por %p285, %p286
      %p288 = scmp.ne.s32.totalorder %s280, %s282
      %p289 = scmp.eq.s32.totalorder %s31, 1
      %p290 = por %p288, %p289
      %p291 = scmp.ne.s32.totalorder %s282, %s283
      %p292 = scmp.eq.s32.totalorder %s31, 0
      %p293 = por %p291, %p292
      %p294 = scmp.ne.s32.totalorder %s282, %s283
      %p295 = scmp.eq.s32.totalorder %s32, 1
      %p296 = por %p294, %p295
      %p298 = scmp.ne.s32.totalorder %s283, %s297
      %p299 = scmp.eq.s32.totalorder %s32, 0
      %p300 = por %p298, %p299
      %s301 = ssub.s32 %s26, %s33
      %p302 = scmp.eq.s32.totalorder %s301, 0
      %s304 = sadd.s32 %s303, 1
      %s305 = scalar_select %p302, %s303, %s304
      %p308 = pneg %p302
      %p309 = scmp.eq.s32.totalorder %s26, 1
      %p310 = por %p308, %p309
      %p311 = scmp.ne.s32.totalorder %s303, %s306
      %p312 = scmp.eq.s32.totalorder %s26, 0
      %p313 = por %p311, %p312
      %p314 = scmp.ne.s32.totalorder %s303, %s306
      %p315 = scmp.eq.s32.totalorder %s31, 1
      %p316 = por %p314, %p315
      %p317 = scmp.ne.s32.totalorder %s306, %s307
      %p318 = scmp.eq.s32.totalorder %s31, 0
      %p319 = por %p317, %p318
      %p320 = scmp.ne.s32.totalorder %s306, %s307
      %p321 = scmp.eq.s32.totalorder %s32, 1
      %p322 = por %p320, %p321
      %p324 = scmp.ne.s32.totalorder %s307, %s323
      %p325 = scmp.eq.s32.totalorder %s32, 0
      %p326 = por %p324, %p325
      %s327 = ssub.s32 %s26, %s33
      %p328 = scmp.eq.s32.totalorder %s327, 0
      %s330 = sadd.s32 %s329, 1
      %s331 = scalar_select %p328, %s329, %s330
      %p334 = pneg %p328
      %p335 = scmp.eq.s32.totalorder %s26, 1
      %p336 = por %p334, %p335
      %p337 = scmp.ne.s32.totalorder %s329, %s332
      %p338 = scmp.eq.s32.totalorder %s26, 0
      %p339 = por %p337, %p338
      %p340 = scmp.ne.s32.totalorder %s329, %s332
      %p341 = scmp.eq.s32.totalorder %s31, 1
      %p342 = por %p340, %p341
      %p343 = scmp.ne.s32.totalorder %s332, %s333
      %p344 = scmp.eq.s32.totalorder %s31, 0
      %p345 = por %p343, %p344
      %p346 = scmp.ne.s32.totalorder %s332, %s333
      %p347 = scmp.eq.s32.totalorder %s32, 1
      %p348 = por %p346, %p347
      %p350 = scmp.ne.s32.totalorder %s333, %s349
      %p351 = scmp.eq.s32.totalorder %s32, 0
      %p352 = por %p350, %p351
      %p353 = scmp.le.s32.totalorder 1, %s26
      %p354 = scmp.lt.s32.totalorder %s26, 3
      %p355 = pnand %p353, %p354
      %p356 = pneg %p355
      // Predicated region
      $region9: #{tpu_custom_call.1} parent=5 // pred_check
        _
      $region10: #{tpu_custom_call.1} parent=5 // pred_check_branch
        %358 = sbr.rel (%p355) target = $region12
      $region11: #{tpu_custom_call.1} parent=5 // pred_region
        %s359 = ssub.s32 %s26, 1
        // Predicated region
        $region13: #{tpu_custom_call.1} parent=11 // pred_check
          %p360 = pneg %p125
        $region14: #{tpu_custom_call.1} parent=11 // pred_check_branch
          %362 = sbr.rel (%p360) target = $region16
        $region15: #{tpu_custom_call.1} parent=11 // pred_region
          _
        $region16: #{tpu_custom_call.1} parent=11 // pred_fallthru
          _
        // Predicated region
        $region17: #{tpu_custom_call.1} parent=11 // pred_check
          %p363 = pneg %p146
        $region18: #{tpu_custom_call.1} parent=11 // pred_check_branch
          %365 = sbr.rel (%p363) target = $region20
        $region19: #{tpu_custom_call.1} parent=11 // pred_region
          _
        $region20: #{tpu_custom_call.1} parent=11 // pred_fallthru
          _
        // Predicated region
        $region21: #{tpu_custom_call.1} parent=11 // pred_check
          %p366 = pneg %p167
        $region22: #{tpu_custom_call.1} parent=11 // pred_check_branch
          %368 = sbr.rel (%p366) target = $region24
        $region23: #{tpu_custom_call.1} parent=11 // pred_region
          _
        $region24: #{tpu_custom_call.1} parent=11 // pred_fallthru
          _
        // Predicated region
        $region25: #{tpu_custom_call.1} parent=11 // pred_check
          %p369 = pneg %p188
        $region26: #{tpu_custom_call.1} parent=11 // pred_check_branch
          %371 = sbr.rel (%p369) target = $region28
        $region27: #{tpu_custom_call.1} parent=11 // pred_region
          _
        $region28: #{tpu_custom_call.1} parent=11 // pred_fallthru
          _
        // Predicated region
        $region29: #{tpu_custom_call.1} parent=11 // pred_check
          %p372 = pneg %p209
        $region30: #{tpu_custom_call.1} parent=11 // pred_check_branch
          %374 = sbr.rel (%p372) target = $region32
        $region31: #{tpu_custom_call.1} parent=11 // pred_region
          _
        $region32: #{tpu_custom_call.1} parent=11 // pred_fallthru
          _
        // Predicated region
        $region33: #{tpu_custom_call.1} parent=11 // pred_check
          %p375 = pneg %p230
        $region34: #{tpu_custom_call.1} parent=11 // pred_check_branch
          %377 = sbr.rel (%p375) target = $region36
        $region35: #{tpu_custom_call.1} parent=11 // pred_region
          _
        $region36: #{tpu_custom_call.1} parent=11 // pred_fallthru
          _
        // Predicated region
        $region37: #{tpu_custom_call.1} parent=11 // pred_check
          %p378 = pneg %p251
        $region38: #{tpu_custom_call.1} parent=11 // pred_check_branch
          %380 = sbr.rel (%p378) target = $region40
        $region39: #{tpu_custom_call.1} parent=11 // pred_region
          _
        $region40: #{tpu_custom_call.1} parent=11 // pred_fallthru
          _
        // Predicated region
        $region41: #{tpu_custom_call.1} parent=11 // pred_check
          %p381 = pneg %p272
        $region42: #{tpu_custom_call.1} parent=11 // pred_check_branch
          %383 = sbr.rel (%p381) target = $region44
        $region43: #{tpu_custom_call.1} parent=11 // pred_region
          _
        $region44: #{tpu_custom_call.1} parent=11 // pred_fallthru
          _
        // Predicated region
        $region45: #{tpu_custom_call.1} parent=11 // pred_check
          %p384 = pneg %p293
        $region46: #{tpu_custom_call.1} parent=11 // pred_check_branch
          %386 = sbr.rel (%p384) target = $region48
        $region47: #{tpu_custom_call.1} parent=11 // pred_region
          _
        $region48: #{tpu_custom_call.1} parent=11 // pred_fallthru
          _
      $region12: #{tpu_custom_call.1} parent=5 // pred_fallthru
        _
      %p387 = scmp.lt.s32.totalorder %s26, 2
      // Predicated region
      $region49: #{tpu_custom_call.1} parent=5 // pred_check
        %p388 = pneg %p387
      $region50: #{tpu_custom_call.1} parent=5 // pred_check_branch
        %390 = sbr.rel (%p388) target = $region52
      $region51: #{tpu_custom_call.1} parent=5 // pred_region
        // Predicated region
        $region53: #{tpu_custom_call.1} parent=51 // pred_check
          %p391 = pneg %p46
        $region54: #{tpu_custom_call.1} parent=51 // pred_check_branch
          %393 = sbr.rel (%p391) target = $region56
        $region55: #{tpu_custom_call.1} parent=51 // pred_region
          %p394 = scmp.lt.s32.totalorder %s26, 1
          %s395 = scalar_select %p394, %s26, 1
          %s396 = smul.addr %s395, 2
          %s397 = smul.addr %s396, 8
          %s398 = scalar_lea.vmem %s0, %s397
        $region56: #{tpu_custom_call.1} parent=51 // pred_fallthru
          _
        // Predicated region
        $region57: #{tpu_custom_call.1} parent=51 // pred_check
          %p399 = pneg %p72
        $region58: #{tpu_custom_call.1} parent=51 // pred_check_branch
          %401 = sbr.rel (%p399) target = $region60
        $region59: #{tpu_custom_call.1} parent=51 // pred_region
          %p402 = scmp.lt.s32.totalorder %s26, 1
          %s403 = scalar_select %p402, %s26, 1
          %s404 = smul.addr %s403, 2
          %s405 = smul.addr %s404, 8
          %s406 = scalar_lea.vmem %s1, %s405
        $region60: #{tpu_custom_call.1} parent=51 // pred_fallthru
          _
        // Predicated region
        $region61: #{tpu_custom_call.1} parent=51 // pred_check
          %p407 = pneg %p98
        $region62: #{tpu_custom_call.1} parent=51 // pred_check_branch
          %409 = sbr.rel (%p407) target = $region64
        $region63: #{tpu_custom_call.1} parent=51 // pred_region
          %p410 = scmp.lt.s32.totalorder %s26, 1
          %s411 = scalar_select %p410, %s26, 1
          %s412 = smul.addr %s411, 2
          %s413 = smul.addr %s412, 8
          %s414 = scalar_lea.vmem %s2, %s413
        $region64: #{tpu_custom_call.1} parent=51 // pred_fallthru
          _
      $region52: #{tpu_custom_call.1} parent=5 // pred_fallthru
        _
      %p415 = scmp.le.s32.totalorder 1, %s26
      %p416 = scmp.lt.s32.totalorder %s26, 3
      %p417 = pnand %p415, %p416
      %p418 = pneg %p417
      // Predicated region
      $region65: #{tpu_custom_call.1} parent=5 // pred_check
        _
      $region66: #{tpu_custom_call.1} parent=5 // pred_check_branch
        %420 = sbr.rel (%p417) target = $region68
      $region67: #{tpu_custom_call.1} parent=5 // pred_region
        %s421 = ssub.s32 %s26, 1
        %p422 = scmp.lt.s32.totalorder %s31, 1
        %s423 = scalar_select %p422, %s31, 1
        %s424 = smul.addr %s423, 2
        %s425 = smul.addr %s424, 8
        %s426 = scalar_lea.vmem %s0, %s425
        %p427 = pneg %p52
        %p428 = pneg %p49
        %p429 = scmp.lt.s32.totalorder %s31, 1
        %s430 = scalar_select %p429, %s31, 1
        %s431 = smul.addr %s430, 2
        %s432 = smul.addr %s431, 8
        %s433 = scalar_lea.vmem %s1, %s432
        %p434 = pneg %p78
        %p435 = pneg %p75
        %p436 = scmp.lt.s32.totalorder %s31, 1
        %s437 = scalar_select %p436, %s31, 1
        %s438 = smul.addr %s437, 2
        %s439 = smul.addr %s438, 8
        %s440 = scalar_lea.vmem %s2, %s439
        %p441 = pneg %p104
        %p442 = pneg %p101
        %p443 = pneg %p125
        %p444 = pneg %p122
        %p445 = pneg %p146
        %p446 = pneg %p143
        %p447 = pneg %p167
        %p448 = pneg %p164
        %p449 = pneg %p188
        %p450 = pneg %p185
        %p451 = pneg %p209
        %p452 = pneg %p206
        %p453 = pneg %p230
        %p454 = pneg %p227
        %p455 = pneg %p251
        %p456 = pneg %p248
        %p457 = pneg %p272
        %p458 = pneg %p269
        %p459 = pneg %p293
        %p460 = pneg %p290
        %p461 = pneg %p319
        %p462 = pneg %p316
        %s463 = sand.u32 %s306, 1
        %s464 = scalar_lea.sflag [#allocation3], %s463
        %s465 = sand.u32 %s306, 1
        %s466 = smul.addr %s465, 16
        %s467 = scalar_lea.vmem [#allocation2], %s466
        %p468 = pneg %p345
        %p469 = pneg %p342
        %s470 = sand.u32 %s332, 1
        %s471 = scalar_lea.sflag [#allocation5], %s470
        %s472 = sand.u32 %s332, 1
        %s473 = smul.addr %s472, 16
        %s474 = scalar_lea.vmem [#allocation4], %s473
        %p475 = scmp.lt.s32.totalorder %s31, 1
        %s476 = scalar_select %p475, %s31, 1
        %s477 = smul.addr %s476, 2
        %s478 = smul.addr %s477, 8
        %s479 = scalar_lea.vmem %s0, %s478
        %p480 = scmp.lt.s32.totalorder %s31, 1
        %s481 = scalar_select %p480, %s31, 1
        %s482 = smul.addr %s481, 2
        %s483 = smul.addr %s482, 8
        %s484 = scalar_lea.vmem %s1, %s483
        %p485 = scmp.lt.s32.totalorder %s31, 1
        %s486 = scalar_select %p485, %s31, 1
        %s487 = smul.addr %s486, 2
        %s488 = smul.addr %s487, 8
        %s489 = scalar_lea.vmem %s2, %s488
        %v490 = vld [vmem:[%s479] sm:$0xff]
        %v491 = vld [vmem:[%s479 + $0x8] sm:$0xff]
        %v492 = vld [vmem:[%s484] sm:$0xff]
        %v493 = vld [vmem:[%s484 + $0x8] sm:$0xff]
        %v494 = vld [vmem:[%s489] sm:$0xff]
        %v495 = vld [vmem:[%s489 + $0x8] sm:$0xff]
        %v496 = vld [vmem:[%s3] sm:$0xff]
        %v497 = vld [vmem:[%s3 + $0x8] sm:$0xff]
        %v498 = vld [vmem:[%s3 + $0x10] sm:$0xff]
        %v499 = vld [vmem:[%s3 + $0x18] sm:$0xff]
        %v500 = vld [vmem:[%s3 + $0x20] sm:$0xff]
        %v501 = vld [vmem:[%s3 + $0x28] sm:$0xff]
        %v502 = vld [vmem:[%s3 + $0x30] sm:$0xff]
        %v503 = vld [vmem:[%s3 + $0x38] sm:$0xff]
        %v504 = vld [vmem:[%s6] sm:$0x1]
        %v505 = vlaneseq
        %v506 = vshrl.u32 %v505, 7
        %v507 = vsub.s32 0, %v506
        %v508 = vrot.slane %v504, %v507
        %vm509 = vcmask 523264
        %v511 = vsel %vm509, %v490, 0
        %v514 = vsel %vm509, %v491, 0
        %516 = vmatprep.subr.mxu0 0.0
        %517 = vmatpush1.msra.mxu0 0.0
        %518 = vmatprep.subr.mxu0 0.0
        %519 = vmatpush1.msra.mxu0 0.0
        %520 = vmatprep.subr.mxu0 0.0
        %521 = vmatpush1.msra.mxu0 0.0
        %522 = vmatprep.subr.mxu0 0.0
        %523 = vmatpush1.msra.mxu0 0.0
        %524 = vmatprep.subr.mxu0 0.0
        %525 = vmatpush1.msra.mxu0 0.0
        %526 = vmatprep.subr.mxu0 0.0
        %527 = vmatpush1.msra.mxu0 0.0
        %528 = vmatprep.subr.mxu0 0.0
        %529 = vmatpush1.msra.mxu0 0.0
        %530 = vmatprep.subr.mxu0 0.0
        %531 = vmatpush1.msra.mxu0 0.0
        %532 = vmatprep.subr.mxu0 0.0
        %533 = vmatpush1.msra.mxu0 %v503
        %534 = vmatprep.subr.mxu0 0.0
        %535 = vmatpush1.msra.mxu0 %v502
        %536 = vmatprep.subr.mxu0 0.0
        %537 = vmatpush1.msra.mxu0 %v501
        %538 = vmatprep.subr.mxu0 0.0
        %539 = vmatpush1.msra.mxu0 %v500
        %540 = vmatprep.subr.mxu0 0.0
        %541 = vmatpush1.msra.mxu0 %v499
        %542 = vmatprep.subr.mxu0 0.0
        %543 = vmatpush1.msra.mxu0 %v498
        %544 = vmatprep.subr.mxu0 0.0
        %545 = vmatpush1.msra.mxu0 %v497
        %546 = vmatprep.subr.mxu0 0.0
        %547 = vmatpush1.msra.mxu0 %v496
        %548 = vmatprep.subr.mxu0 0.0
        %549 = vmatpush2.msra.mxu0 0.0
        %550 = vmatprep.subr.mxu0 0.0
        %551 = vmatpush2.msra.mxu0 0.0
        %552 = vmatprep.subr.mxu0 0.0
        %553 = vmatpush2.msra.mxu0 0.0
        %554 = vmatprep.subr.mxu0 0.0
        %555 = vmatpush2.msra.mxu0 0.0
        %556 = vmatprep.subr.mxu0 0.0
        %557 = vmatpush2.msra.mxu0 0.0
        %558 = vmatprep.subr.mxu0 0.0
        %559 = vmatpush2.msra.mxu0 0.0
        %560 = vmatprep.subr.mxu0 0.0
        %561 = vmatpush2.msra.mxu0 0.0
        %562 = vmatprep.subr.mxu0 0.0
        %563 = vmatpush2.msra.mxu0 0.0
        %564 = vmatprep.subr.mxu0 0.0
        %565 = vmatpush2.msra.mxu0 0.0
        %566 = vmatprep.subr.mxu0 0.0
        %567 = vmatpush2.msra.mxu0 0.0
        %568 = vmatprep.subr.mxu0 0.0
        %569 = vmatpush2.msra.mxu0 0.0
        %570 = vmatprep.subr.mxu0 0.0
        %571 = vmatpush2.msra.mxu0 0.0
        %572 = vmatprep.subr.mxu0 0.0
        %573 = vmatpush2.msra.mxu0 0.0
        %574 = vmatprep.subr.mxu0 0.0
        %575 = vmatpush2.msra.mxu0 0.0
        %576 = vmatprep.subr.mxu0 0.0
        %577 = vmatpush2.msra.mxu0 0.0
        %578 = vmatprep.subr.mxu0 0.0
        %579 = vmatpush2.msra.mxu0 0.0
        %580 = vmatprep.mubr.f32.mxu0 0.0
        %581 = vmatmul.mubr.f32.gmra.mxu0 %v511
        %v582 = vpop.f32.mrf.mxu0
        %v583 = vadd.f32 %v508, %v582
        %v584 = vpop.f32.mrf.mxu0
        %585 = vmatprep.mubr.f32.mxu0 0.0
        %586 = vmatmul.mubr.f32.gmra.mxu0 %v514
        %v587 = vpop.f32.mrf.mxu0
        %v588 = vadd.f32 %v508, %v587
        %v589 = vpop.f32.mrf.mxu0
        %590 = vdwg.mxu0
        %v591 = vld [vmem:[%s4] sm:$0xff]
        %v592 = vld [vmem:[%s4 + $0x8] sm:$0xff]
        %v593 = vld [vmem:[%s4 + $0x10] sm:$0xff]
        %v594 = vld [vmem:[%s4 + $0x18] sm:$0xff]
        %v595 = vld [vmem:[%s4 + $0x20] sm:$0xff]
        %v596 = vld [vmem:[%s4 + $0x28] sm:$0xff]
        %v597 = vld [vmem:[%s4 + $0x30] sm:$0xff]
        %v598 = vld [vmem:[%s4 + $0x38] sm:$0xff]
        %v599 = vld [vmem:[%s6 + $0x1] sm:$0x1]
        %v600 = vlaneseq
        %v601 = vshrl.u32 %v600, 7
        %v602 = vsub.s32 0, %v601
        %v603 = vrot.slane %v599, %v602
        %v605 = vsel %vm509, %v492, 0
        %v608 = vsel %vm509, %v493, 0
        %610 = vmatprep.subr.mxu0 0.0
        %611 = vmatpush1.msra.mxu0 0.0
        %612 = vmatprep.subr.mxu0 0.0
        %613 = vmatpush1.msra.mxu0 0.0
        %614 = vmatprep.subr.mxu0 0.0
        %615 = vmatpush1.msra.mxu0 0.0
        %616 = vmatprep.subr.mxu0 0.0
        %617 = vmatpush1.msra.mxu0 0.0
        %618 = vmatprep.subr.mxu0 0.0
        %619 = vmatpush1.msra.mxu0 0.0
        %620 = vmatprep.subr.mxu0 0.0
        %621 = vmatpush1.msra.mxu0 0.0
        %622 = vmatprep.subr.mxu0 0.0
        %623 = vmatpush1.msra.mxu0 0.0
        %624 = vmatprep.subr.mxu0 0.0
        %625 = vmatpush1.msra.mxu0 0.0
        %626 = vmatprep.subr.mxu0 0.0
        %627 = vmatpush1.msra.mxu0 %v598
        %628 = vmatprep.subr.mxu0 0.0
        %629 = vmatpush1.msra.mxu0 %v597
        %630 = vmatprep.subr.mxu0 0.0
        %631 = vmatpush1.msra.mxu0 %v596
        %632 = vmatprep.subr.mxu0 0.0
        %633 = vmatpush1.msra.mxu0 %v595
        %634 = vmatprep.subr.mxu0 0.0
        %635 = vmatpush1.msra.mxu0 %v594
        %636 = vmatprep.subr.mxu0 0.0
        %637 = vmatpush1.msra.mxu0 %v593
        %638 = vmatprep.subr.mxu0 0.0
        %639 = vmatpush1.msra.mxu0 %v592
        %640 = vmatprep.subr.mxu0 0.0
        %641 = vmatpush1.msra.mxu0 %v591
        %642 = vmatprep.subr.mxu0 0.0
        %643 = vmatpush2.msra.mxu0 0.0
        %644 = vmatprep.subr.mxu0 0.0
        %645 = vmatpush2.msra.mxu0 0.0
        %646 = vmatprep.subr.mxu0 0.0
        %647 = vmatpush2.msra.mxu0 0.0
        %648 = vmatprep.subr.mxu0 0.0
        %649 = vmatpush2.msra.mxu0 0.0
        %650 = vmatprep.subr.mxu0 0.0
        %651 = vmatpush2.msra.mxu0 0.0
        %652 = vmatprep.subr.mxu0 0.0
        %653 = vmatpush2.msra.mxu0 0.0
        %654 = vmatprep.subr.mxu0 0.0
        %655 = vmatpush2.msra.mxu0 0.0
        %656 = vmatprep.subr.mxu0 0.0
        %657 = vmatpush2.msra.mxu0 0.0
        %658 = vmatprep.subr.mxu0 0.0
        %659 = vmatpush2.msra.mxu0 0.0
        %660 = vmatprep.subr.mxu0 0.0
        %661 = vmatpush2.msra.mxu0 0.0
        %662 = vmatprep.subr.mxu0 0.0
        %663 = vmatpush2.msra.mxu0 0.0
        %664 = vmatprep.subr.mxu0 0.0
        %665 = vmatpush2.msra.mxu0 0.0
        %666 = vmatprep.subr.mxu0 0.0
        %667 = vmatpush2.msra.mxu0 0.0
        %668 = vmatprep.subr.mxu0 0.0
        %669 = vmatpush2.msra.mxu0 0.0
        %670 = vmatprep.subr.mxu0 0.0
        %671 = vmatpush2.msra.mxu0 0.0
        %672 = vmatprep.subr.mxu0 0.0
        %673 = vmatpush2.msra.mxu0 0.0
        %674 = vmatprep.mubr.f32.mxu0 0.0
        %675 = vmatmul.mubr.f32.gmra.mxu0 %v605
        %v676 = vpop.f32.mrf.mxu0
        %v677 = vadd.f32 %v603, %v676
        %v678 = vpop.f32.mrf.mxu0
        %679 = vmatprep.mubr.f32.mxu0 0.0
        %680 = vmatmul.mubr.f32.gmra.mxu0 %v608
        %v681 = vpop.f32.mrf.mxu0
        %v682 = vadd.f32 %v603, %v681
        %v683 = vpop.f32.mrf.mxu0
        %684 = vdwg.mxu0
        %v685 = vld [vmem:[%s5] sm:$0xff]
        %v686 = vld [vmem:[%s5 + $0x8] sm:$0xff]
        %v687 = vld [vmem:[%s5 + $0x10] sm:$0xff]
        %v688 = vld [vmem:[%s5 + $0x18] sm:$0xff]
        %v689 = vld [vmem:[%s5 + $0x20] sm:$0xff]
        %v690 = vld [vmem:[%s5 + $0x28] sm:$0xff]
        %v691 = vld [vmem:[%s5 + $0x30] sm:$0xff]
        %v692 = vld [vmem:[%s5 + $0x38] sm:$0xff]
        %v693 = vld [vmem:[%s6 + $0x2] sm:$0x1]
        %v694 = vlaneseq
        %v695 = vshrl.u32 %v694, 7
        %v696 = vsub.s32 0, %v695
        %v697 = vrot.slane %v693, %v696
        %v699 = vsel %vm509, %v494, 0
        %v702 = vsel %vm509, %v495, 0
        %704 = vmatprep.subr.mxu0 0.0
        %705 = vmatpush1.msra.mxu0 0.0
        %706 = vmatprep.subr.mxu0 0.0
        %707 = vmatpush1.msra.mxu0 0.0
        %708 = vmatprep.subr.mxu0 0.0
        %709 = vmatpush1.msra.mxu0 0.0
        %710 = vmatprep.subr.mxu0 0.0
        %711 = vmatpush1.msra.mxu0 0.0
        %712 = vmatprep.subr.mxu0 0.0
        %713 = vmatpush1.msra.mxu0 0.0
        %714 = vmatprep.subr.mxu0 0.0
        %715 = vmatpush1.msra.mxu0 0.0
        %716 = vmatprep.subr.mxu0 0.0
        %717 = vmatpush1.msra.mxu0 0.0
        %718 = vmatprep.subr.mxu0 0.0
        %719 = vmatpush1.msra.mxu0 0.0
        %720 = vmatprep.subr.mxu0 0.0
        %721 = vmatpush1.msra.mxu0 %v692
        %722 = vmatprep.subr.mxu0 0.0
        %723 = vmatpush1.msra.mxu0 %v691
        %724 = vmatprep.subr.mxu0 0.0
        %725 = vmatpush1.msra.mxu0 %v690
        %726 = vmatprep.subr.mxu0 0.0
        %727 = vmatpush1.msra.mxu0 %v689
        %728 = vmatprep.subr.mxu0 0.0
        %729 = vmatpush1.msra.mxu0 %v688
        %730 = vmatprep.subr.mxu0 0.0
        %731 = vmatpush1.msra.mxu0 %v687
        %732 = vmatprep.subr.mxu0 0.0
        %733 = vmatpush1.msra.mxu0 %v686
        %734 = vmatprep.subr.mxu0 0.0
        %735 = vmatpush1.msra.mxu0 %v685
        %736 = vmatprep.subr.mxu0 0.0
        %737 = vmatpush2.msra.mxu0 0.0
        %738 = vmatprep.subr.mxu0 0.0
        %739 = vmatpush2.msra.mxu0 0.0
        %740 = vmatprep.subr.mxu0 0.0
        %741 = vmatpush2.msra.mxu0 0.0
        %742 = vmatprep.subr.mxu0 0.0
        %743 = vmatpush2.msra.mxu0 0.0
        %744 = vmatprep.subr.mxu0 0.0
        %745 = vmatpush2.msra.mxu0 0.0
        %746 = vmatprep.subr.mxu0 0.0
        %747 = vmatpush2.msra.mxu0 0.0
        %748 = vmatprep.subr.mxu0 0.0
        %749 = vmatpush2.msra.mxu0 0.0
        %750 = vmatprep.subr.mxu0 0.0
        %751 = vmatpush2.msra.mxu0 0.0
        %752 = vmatprep.subr.mxu0 0.0
        %753 = vmatpush2.msra.mxu0 0.0
        %754 = vmatprep.subr.mxu0 0.0
        %755 = vmatpush2.msra.mxu0 0.0
        %756 = vmatprep.subr.mxu0 0.0
        %757 = vmatpush2.msra.mxu0 0.0
        %758 = vmatprep.subr.mxu0 0.0
        %759 = vmatpush2.msra.mxu0 0.0
        %760 = vmatprep.subr.mxu0 0.0
        %761 = vmatpush2.msra.mxu0 0.0
        %762 = vmatprep.subr.mxu0 0.0
        %763 = vmatpush2.msra.mxu0 0.0
        %764 = vmatprep.subr.mxu0 0.0
        %765 = vmatpush2.msra.mxu0 0.0
        %766 = vmatprep.subr.mxu0 0.0
        %767 = vmatpush2.msra.mxu0 0.0
        %768 = vmatprep.mubr.f32.mxu0 0.0
        %769 = vmatmul.mubr.f32.gmra.mxu0 %v699
        %v770 = vpop.f32.mrf.mxu0
        %v771 = vadd.f32 %v697, %v770
        %v772 = vpop.f32.mrf.mxu0
        %773 = vmatprep.mubr.f32.mxu0 0.0
        %774 = vmatmul.mubr.f32.gmra.mxu0 %v702
        %v775 = vpop.f32.mrf.mxu0
        %v776 = vadd.f32 %v697, %v775
        %v777 = vpop.f32.mrf.mxu0
        %778 = vdwg.mxu0
        %vm781 = vcmask 1043456
        %v782 = vrot.slane %v677, 4
        %v783 = vrot.slane %v682, 4
        %v784 = vsel %vm781, %v782, %v783
        %v787 = vsel %vm781, 0.0, %v782
        %v790 = vrot.slane %v771, 4
        %v791 = vrot.slane %v776, 4
        %v792 = vsel %vm781, %v790, %v791
        %v796 = vsel %vm781, 0.0, %v790
        %vm798 = vcmask 1046528
        %v799 = vrot.slane %v677, 1
        %v800 = vrot.slane %v682, 1
        %v801 = vsel %vm798, %v799, %v800
        %v802 = vrot.slane %v787, 1
        %v803 = vsel %vm798, %v800, %v802
        %v806 = vmul.f32 %v583, %v801
        %v807 = vmul.f32 %v588, %v803
        %v808 = vrot.slane %v787, 4
        %v809 = vrot.slane %v784, 4
        %v810 = vsel %vm781, %v808, %v809
        %v811 = vrot.slane %v783, 4
        %v812 = vsel %vm781, %v809, %v811
        %v815 = vmul.f32 %v583, %v810
        %v816 = vmul.f32 %v588, %v812
        %vm817 = vcmask 1044480
        %v818 = vrot.slane %v787, 3
        %v819 = vrot.slane %v784, 3
        %v820 = vsel %vm817, %v818, %v819
        %v821 = vrot.slane %v783, 3
        %v822 = vsel %vm817, %v819, %v821
        %v825 = vmul.f32 %v583, %v820
        %v826 = vmul.f32 %v588, %v822
        %vm827 = vcmask 1045504
        %v828 = vrot.slane %v787, 2
        %v829 = vrot.slane %v784, 2
        %v830 = vsel %vm827, %v828, %v829
        %v831 = vrot.slane %v783, 2
        %v832 = vsel %vm827, %v829, %v831
        %v835 = vmul.f32 %v583, %v830
        %v836 = vmul.f32 %v588, %v832
        %v837 = vrot.slane %v784, 1
        %v838 = vsel %vm798, %v802, %v837
        %v839 = vrot.slane %v783, 1
        %v840 = vsel %vm798, %v837, %v839
        %v843 = vmul.f32 %v583, %v838
        %v844 = vmul.f32 %v588, %v840
        %v845 = vmul.f32 %v583, %v787
        %v846 = vmul.f32 %v588, %v784
        %849 = vrot.lane.b32.xlu0 %v815, 64
        %v850 = vpop.permute.xlu0 %849
        %851 = vrot.lane.b32.xlu0 %v816, 64
        %v852 = vpop.permute.xlu0 %851
        %857 = vrot.lane.b32.xlu0 %v835, 64
        %v858 = vpop.permute.xlu0 %857
        %859 = vrot.lane.b32.xlu0 %v836, 64
        %v860 = vpop.permute.xlu0 %859
        %865 = vrot.lane.b32.xlu0 %v845, 64
        %v866 = vpop.permute.xlu0 %865
        %867 = vrot.lane.b32.xlu0 %v846, 64
        %v868 = vpop.permute.xlu0 %867
        %v871 = vsel %vm509, %v806, %v850
        %v872 = vsel %vm509, %v807, %v852
        %v873 = vsel %vm509, %v825, %v858
        %v874 = vsel %vm509, %v826, %v860
        %v875 = vsel %vm509, %v843, %v866
        %v876 = vsel %vm509, %v844, %v868
        %v878 = vrot.slane %v796, 3
        %v879 = vrot.slane %v792, 3
        %v880 = vsel %vm817, %v878, %v879
        %v881 = vrot.slane %v791, 3
        %v882 = vsel %vm817, %v879, %v881
        %883 = vrot.lane.b32.xlu0 %v880, 64
        %v884 = vpop.permute.xlu0 %883
        %885 = vrot.lane.b32.xlu0 %v882, 64
        %v886 = vpop.permute.xlu0 %885
        %887 = vrot.lane.b32.xlu0 %v881, 64
        %v888 = vpop.permute.xlu0 %887
        %v892 = vrot.slane %v796, 2
        %v893 = vrot.slane %v792, 2
        %v894 = vsel %vm827, %v892, %v893
        %v895 = vrot.slane %v791, 2
        %v896 = vsel %vm827, %v893, %v895
        %v900 = vrot.slane %v796, 1
        %v901 = vrot.slane %v792, 1
        %v902 = vsel %vm798, %v900, %v901
        %v903 = vrot.slane %v791, 1
        %v904 = vsel %vm798, %v901, %v903
        %905 = vrot.lane.b32.xlu0 %v902, 64
        %v906 = vpop.permute.xlu0 %905
        %907 = vrot.lane.b32.xlu0 %v904, 64
        %v908 = vpop.permute.xlu0 %907
        %909 = vrot.lane.b32.xlu0 %v903, 64
        %v910 = vpop.permute.xlu0 %909
        %vm914 = vcmask 1040384
        %v915 = vrot.slane %v796, 7
        %v916 = vrot.slane %v792, 7
        %v917 = vsel %vm914, %v915, %v916
        %918 = vrot.lane.b32.xlu0 %v915, 64
        %v919 = vpop.permute.xlu0 %918
        %920 = vrot.lane.b32.xlu0 %v917, 64
        %v921 = vpop.permute.xlu0 %920
        %922 = vrot.lane.b32.xlu0 %v916, 64
        %v923 = vpop.permute.xlu0 %922
        %v927 = vsel %vm509, %v771, %v884
        %v928 = vsel %vm509, %v776, %v886
        %v929 = vsel %vm509, %v796, %v888
        %v930 = vsel %vm509, %v894, %v906
        %v931 = vsel %vm509, %v896, %v908
        %v932 = vsel %vm509, %v895, %v910
        %v933 = vsel %vm509, %v796, %v919
        %v934 = vsel %vm509, %v792, %v921
        %v935 = vsel %vm509, %v791, %v923
        %v936 = vld [vmem:[%s8] sm:$0xff]
        %v937 = vld [vmem:[%s8 + $0x8] sm:$0xff]
        %v938 = vld [vmem:[%s8 + $0x10] sm:$0xff]
        %v939 = vld [vmem:[%s8 + $0x18] sm:$0xff]
        %v940 = vld [vmem:[%s8 + $0x20] sm:$0xff]
        %v941 = vld [vmem:[%s8 + $0x28] sm:$0xff]
        %v942 = vld [vmem:[%s8 + $0x30] sm:$0xff]
        %v943 = vld [vmem:[%s8 + $0x38] sm:$0xff]
        %v944 = vld [vmem:[%s8 + $0x40] sm:$0xff]
        %v945 = vld [vmem:[%s8 + $0x48] sm:$0xff]
        %v946 = vld [vmem:[%s8 + $0x50] sm:$0xff]
        %v947 = vld [vmem:[%s8 + $0x58] sm:$0xff]
        %v948 = vld [vmem:[%s8 + $0x60] sm:$0xff]
        %v949 = vld [vmem:[%s8 + $0x68] sm:$0xff]
        %v950 = vld [vmem:[%s8 + $0x70] sm:$0xff]
        %v951 = vld [vmem:[%s8 + $0x78] sm:$0xff]
        %v952 = vld [vmem:[%s8 + $0x80] sm:$0xff]
        %v953 = vld [vmem:[%s8 + $0x88] sm:$0xff]
        %v954 = vld [vmem:[%s8 + $0x90] sm:$0xff]
        %v955 = vld [vmem:[%s8 + $0x98] sm:$0xff]
        %v956 = vld [vmem:[%s8 + $0xa0] sm:$0xff]
        %v957 = vld [vmem:[%s8 + $0xa8] sm:$0xff]
        %v958 = vld [vmem:[%s8 + $0xb0] sm:$0xff]
        %v959 = vld [vmem:[%s8 + $0xb8] sm:$0xff]
        %v960 = vld [vmem:[%s8 + $0xc0] sm:$0xff]
        %v961 = vld [vmem:[%s8 + $0xc8] sm:$0xff]
        %v962 = vld [vmem:[%s8 + $0xd0] sm:$0xff]
        %v963 = vld [vmem:[%s8 + $0xd8] sm:$0xff]
        %v964 = vld [vmem:[%s8 + $0xe0] sm:$0xff]
        %v965 = vld [vmem:[%s8 + $0xe8] sm:$0xff]
        %v966 = vld [vmem:[%s8 + $0xf0] sm:$0xff]
        %v967 = vld [vmem:[%s8 + $0xf8] sm:$0xff]
        %v968 = vld [vmem:[%s8 + $0x100] sm:$0xff]
        %v969 = vld [vmem:[%s8 + $0x108] sm:$0xff]
        %v970 = vld [vmem:[%s8 + $0x110] sm:$0xff]
        %v971 = vld [vmem:[%s8 + $0x118] sm:$0xff]
        %v972 = vld [vmem:[%s8 + $0x120] sm:$0xff]
        %v973 = vld [vmem:[%s8 + $0x128] sm:$0xff]
        %v974 = vld [vmem:[%s8 + $0x130] sm:$0xff]
        %v975 = vld [vmem:[%s8 + $0x138] sm:$0xff]
        %v976 = vld [vmem:[%s8 + $0x140] sm:$0xff]
        %v977 = vld [vmem:[%s8 + $0x148] sm:$0xff]
        %v978 = vld [vmem:[%s8 + $0x150] sm:$0xff]
        %v979 = vld [vmem:[%s8 + $0x158] sm:$0xff]
        %v980 = vld [vmem:[%s8 + $0x160] sm:$0xff]
        %v981 = vld [vmem:[%s8 + $0x168] sm:$0xff]
        %v982 = vld [vmem:[%s8 + $0x170] sm:$0xff]
        %v983 = vld [vmem:[%s8 + $0x178] sm:$0xff]
        %984 = vmatprep.subr.mxu0 0.0
        %985 = vmatpush1.msra.mxu0 %v951
        %986 = vmatprep.subr.mxu0 0.0
        %987 = vmatpush1.msra.mxu0 %v950
        %988 = vmatprep.subr.mxu0 0.0
        %989 = vmatpush1.msra.mxu0 %v949
        %990 = vmatprep.subr.mxu0 0.0
        %991 = vmatpush1.msra.mxu0 %v948
        %992 = vmatprep.subr.mxu0 0.0
        %993 = vmatpush1.msra.mxu0 %v947
        %994 = vmatprep.subr.mxu0 0.0
        %995 = vmatpush1.msra.mxu0 %v946
        %996 = vmatprep.subr.mxu0 0.0
        %997 = vmatpush1.msra.mxu0 %v945
        %998 = vmatprep.subr.mxu0 0.0
        %999 = vmatpush1.msra.mxu0 %v944
        %1000 = vmatprep.subr.mxu0 0.0
        %1001 = vmatpush1.msra.mxu0 %v943
        %1002 = vmatprep.subr.mxu0 0.0
        %1003 = vmatpush1.msra.mxu0 %v942
        %1004 = vmatprep.subr.mxu0 0.0
        %1005 = vmatpush1.msra.mxu0 %v941
        %1006 = vmatprep.subr.mxu0 0.0
        %1007 = vmatpush1.msra.mxu0 %v940
        %1008 = vmatprep.subr.mxu0 0.0
        %1009 = vmatpush1.msra.mxu0 %v939
        %1010 = vmatprep.subr.mxu0 0.0
        %1011 = vmatpush1.msra.mxu0 %v938
        %1012 = vmatprep.subr.mxu0 0.0
        %1013 = vmatpush1.msra.mxu0 %v937
        %1014 = vmatprep.subr.mxu0 0.0
        %1015 = vmatpush1.msra.mxu0 %v936
        %1016 = vmatprep.subr.mxu0 0.0
        %1017 = vmatpush2.msra.mxu0 %v967
        %1018 = vmatprep.subr.mxu0 0.0
        %1019 = vmatpush2.msra.mxu0 %v966
        %1020 = vmatprep.subr.mxu0 0.0
        %1021 = vmatpush2.msra.mxu0 %v965
        %1022 = vmatprep.subr.mxu0 0.0
        %1023 = vmatpush2.msra.mxu0 %v964
        %1024 = vmatprep.subr.mxu0 0.0
        %1025 = vmatpush2.msra.mxu0 %v963
        %1026 = vmatprep.subr.mxu0 0.0
        %1027 = vmatpush2.msra.mxu0 %v962
        %1028 = vmatprep.subr.mxu0 0.0
        %1029 = vmatpush2.msra.mxu0 %v961
        %1030 = vmatprep.subr.mxu0 0.0
        %1031 = vmatpush2.msra.mxu0 %v960
        %1032 = vmatprep.subr.mxu0 0.0
        %1033 = vmatpush2.msra.mxu0 %v959
        %1034 = vmatprep.subr.mxu0 0.0
        %1035 = vmatpush2.msra.mxu0 %v958
        %1036 = vmatprep.subr.mxu0 0.0
        %1037 = vmatpush2.msra.mxu0 %v957
        %1038 = vmatprep.subr.mxu0 0.0
        %1039 = vmatpush2.msra.mxu0 %v956
        %1040 = vmatprep.subr.mxu0 0.0
        %1041 = vmatpush2.msra.mxu0 %v955
        %1042 = vmatprep.subr.mxu0 0.0
        %1043 = vmatpush2.msra.mxu0 %v954
        %1044 = vmatprep.subr.mxu0 0.0
        %1045 = vmatpush2.msra.mxu0 %v953
        %1046 = vmatprep.subr.mxu0 0.0
        %1047 = vmatpush2.msra.mxu0 %v952
        %1048 = vmatprep.mubr.f32.mxu0 %v873
        %1049 = vmatmul.mubr.f32.gmra.mxu0 %v871
        %v1050 = vpop.f32.mrf.mxu0
        %v1051 = vadd.f32 0.0, %v1050
        %v1052 = vpop.f32.mrf.mxu0
        %1053 = vmatprep.mubr.f32.mxu0 %v874
        %1054 = vmatmul.mubr.f32.gmra.mxu0 %v872
        %v1055 = vpop.f32.mrf.mxu0
        %v1056 = vadd.f32 0.0, %v1055
        %v1057 = vpop.f32.mrf.mxu0
        %1058 = vdwg.mxu0
        %1059 = vmatprep.subr.mxu0 0.0
        %1060 = vmatpush1.msra.mxu0 %v983
        %1061 = vmatprep.subr.mxu0 0.0
        %1062 = vmatpush1.msra.mxu0 %v982
        %1063 = vmatprep.subr.mxu0 0.0
        %1064 = vmatpush1.msra.mxu0 %v981
        %1065 = vmatprep.subr.mxu0 0.0
        %1066 = vmatpush1.msra.mxu0 %v980
        %1067 = vmatprep.subr.mxu0 0.0
        %1068 = vmatpush1.msra.mxu0 %v979
        %1069 = vmatprep.subr.mxu0 0.0
        %1070 = vmatpush1.msra.mxu0 %v978
        %1071 = vmatprep.subr.mxu0 0.0
        %1072 = vmatpush1.msra.mxu0 %v977
        %1073 = vmatprep.subr.mxu0 0.0
        %1074 = vmatpush1.msra.mxu0 %v976
        %1075 = vmatprep.subr.mxu0 0.0
        %1076 = vmatpush1.msra.mxu0 %v975
        %1077 = vmatprep.subr.mxu0 0.0
        %1078 = vmatpush1.msra.mxu0 %v974
        %1079 = vmatprep.subr.mxu0 0.0
        %1080 = vmatpush1.msra.mxu0 %v973
        %1081 = vmatprep.subr.mxu0 0.0
        %1082 = vmatpush1.msra.mxu0 %v972
        %1083 = vmatprep.subr.mxu0 0.0
        %1084 = vmatpush1.msra.mxu0 %v971
        %1085 = vmatprep.subr.mxu0 0.0
        %1086 = vmatpush1.msra.mxu0 %v970
        %1087 = vmatprep.subr.mxu0 0.0
        %1088 = vmatpush1.msra.mxu0 %v969
        %1089 = vmatprep.subr.mxu0 0.0
        %1090 = vmatpush1.msra.mxu0 %v968
        %1091 = vmatprep.subr.mxu0 0.0
        %1092 = vmatpush2.msra.mxu0 0.0
        %1093 = vmatprep.subr.mxu0 0.0
        %1094 = vmatpush2.msra.mxu0 0.0
        %1095 = vmatprep.subr.mxu0 0.0
        %1096 = vmatpush2.msra.mxu0 0.0
        %1097 = vmatprep.subr.mxu0 0.0
        %1098 = vmatpush2.msra.mxu0 0.0
        %1099 = vmatprep.subr.mxu0 0.0
        %1100 = vmatpush2.msra.mxu0 0.0
        %1101 = vmatprep.subr.mxu0 0.0
        %1102 = vmatpush2.msra.mxu0 0.0
        %1103 = vmatprep.subr.mxu0 0.0
        %1104 = vmatpush2.msra.mxu0 0.0
        %1105 = vmatprep.subr.mxu0 0.0
        %1106 = vmatpush2.msra.mxu0 0.0
        %1107 = vmatprep.subr.mxu0 0.0
        %1108 = vmatpush2.msra.mxu0 0.0
        %1109 = vmatprep.subr.mxu0 0.0
        %1110 = vmatpush2.msra.mxu0 0.0
        %1111 = vmatprep.subr.mxu0 0.0
        %1112 = vmatpush2.msra.mxu0 0.0
        %1113 = vmatprep.subr.mxu0 0.0
        %1114 = vmatpush2.msra.mxu0 0.0
        %1115 = vmatprep.subr.mxu0 0.0
        %1116 = vmatpush2.msra.mxu0 0.0
        %1117 = vmatprep.subr.mxu0 0.0
        %1118 = vmatpush2.msra.mxu0 0.0
        %1119 = vmatprep.subr.mxu0 0.0
        %1120 = vmatpush2.msra.mxu0 0.0
        %1121 = vmatprep.subr.mxu0 0.0
        %1122 = vmatpush2.msra.mxu0 0.0
        %1123 = vmatprep.mubr.f32.mxu0 0.0
        %1124 = vmatmul.mubr.f32.gmra.mxu0 %v875
        %v1125 = vpop.f32.mrf.mxu0
        %v1126 = vadd.f32 %v1051, %v1125
        %v1127 = vpop.f32.mrf.mxu0
        %1128 = vmatprep.mubr.f32.mxu0 0.0
        %1129 = vmatmul.mubr.f32.gmra.mxu0 %v876
        %v1130 = vpop.f32.mrf.mxu0
        %v1131 = vadd.f32 %v1056, %v1130
        %v1132 = vpop.f32.mrf.mxu0
        %1133 = vdwg.mxu0
        %v1134 = vld [vmem:[%s7] sm:$0xff]
        %v1135 = vld [vmem:[%s7 + $0x8] sm:$0xff]
        %v1136 = vld [vmem:[%s7 + $0x10] sm:$0xff]
        %v1137 = vld [vmem:[%s7 + $0x18] sm:$0xff]
        %v1138 = vld [vmem:[%s7 + $0x20] sm:$0xff]
        %v1139 = vld [vmem:[%s7 + $0x28] sm:$0xff]
        %v1140 = vld [vmem:[%s7 + $0x30] sm:$0xff]
        %v1141 = vld [vmem:[%s7 + $0x38] sm:$0xff]
        %v1143 = vsel %vm509, %v583, 0
        %v1146 = vsel %vm509, %v588, 0
        %1148 = vmatprep.subr.mxu0 0.0
        %1149 = vmatpush1.msra.mxu0 0.0
        %1150 = vmatprep.subr.mxu0 0.0
        %1151 = vmatpush1.msra.mxu0 0.0
        %1152 = vmatprep.subr.mxu0 0.0
        %1153 = vmatpush1.msra.mxu0 0.0
        %1154 = vmatprep.subr.mxu0 0.0
        %1155 = vmatpush1.msra.mxu0 0.0
        %1156 = vmatprep.subr.mxu0 0.0
        %1157 = vmatpush1.msra.mxu0 0.0
        %1158 = vmatprep.subr.mxu0 0.0
        %1159 = vmatpush1.msra.mxu0 0.0
        %1160 = vmatprep.subr.mxu0 0.0
        %1161 = vmatpush1.msra.mxu0 0.0
        %1162 = vmatprep.subr.mxu0 0.0
        %1163 = vmatpush1.msra.mxu0 0.0
        %1164 = vmatprep.subr.mxu0 0.0
        %1165 = vmatpush1.msra.mxu0 %v1141
        %1166 = vmatprep.subr.mxu0 0.0
        %1167 = vmatpush1.msra.mxu0 %v1140
        %1168 = vmatprep.subr.mxu0 0.0
        %1169 = vmatpush1.msra.mxu0 %v1139
        %1170 = vmatprep.subr.mxu0 0.0
        %1171 = vmatpush1.msra.mxu0 %v1138
        %1172 = vmatprep.subr.mxu0 0.0
        %1173 = vmatpush1.msra.mxu0 %v1137
        %1174 = vmatprep.subr.mxu0 0.0
        %1175 = vmatpush1.msra.mxu0 %v1136
        %1176 = vmatprep.subr.mxu0 0.0
        %1177 = vmatpush1.msra.mxu0 %v1135
        %1178 = vmatprep.subr.mxu0 0.0
        %1179 = vmatpush1.msra.mxu0 %v1134
        %1180 = vmatprep.subr.mxu0 0.0
        %1181 = vmatpush2.msra.mxu0 0.0
        %1182 = vmatprep.subr.mxu0 0.0
        %1183 = vmatpush2.msra.mxu0 0.0
        %1184 = vmatprep.subr.mxu0 0.0
        %1185 = vmatpush2.msra.mxu0 0.0
        %1186 = vmatprep.subr.mxu0 0.0
        %1187 = vmatpush2.msra.mxu0 0.0
        %1188 = vmatprep.subr.mxu0 0.0
        %1189 = vmatpush2.msra.mxu0 0.0
        %1190 = vmatprep.subr.mxu0 0.0
        %1191 = vmatpush2.msra.mxu0 0.0
        %1192 = vmatprep.subr.mxu0 0.0
        %1193 = vmatpush2.msra.mxu0 0.0
        %1194 = vmatprep.subr.mxu0 0.0
        %1195 = vmatpush2.msra.mxu0 0.0
        %1196 = vmatprep.subr.mxu0 0.0
        %1197 = vmatpush2.msra.mxu0 0.0
        %1198 = vmatprep.subr.mxu0 0.0
        %1199 = vmatpush2.msra.mxu0 0.0
        %1200 = vmatprep.subr.mxu0 0.0
        %1201 = vmatpush2.msra.mxu0 0.0
        %1202 = vmatprep.subr.mxu0 0.0
        %1203 = vmatpush2.msra.mxu0 0.0
        %1204 = vmatprep.subr.mxu0 0.0
        %1205 = vmatpush2.msra.mxu0 0.0
        %1206 = vmatprep.subr.mxu0 0.0
        %1207 = vmatpush2.msra.mxu0 0.0
        %1208 = vmatprep.subr.mxu0 0.0
        %1209 = vmatpush2.msra.mxu0 0.0
        %1210 = vmatprep.subr.mxu0 0.0
        %1211 = vmatpush2.msra.mxu0 0.0
        %1212 = vmatprep.mubr.f32.mxu0 0.0
        %1213 = vmatmul.mubr.f32.gmra.mxu0 %v1143
        %v1214 = vpop.f32.mrf.mxu0
        %v1215 = vadd.f32 0.0, %v1214
        %v1216 = vpop.f32.mrf.mxu0
        %1217 = vmatprep.mubr.f32.mxu0 0.0
        %1218 = vmatmul.mubr.f32.gmra.mxu0 %v1146
        %v1219 = vpop.f32.mrf.mxu0
        %v1220 = vadd.f32 0.0, %v1219
        %v1221 = vpop.f32.mrf.mxu0
        %1222 = vdwg.mxu0
        %vm1223 = vcmp.eq.f32.partialorder %v1126, 0.0
        %vm1224 = vcmp.eq.f32.partialorder %v1131, 0.0
        %v1225 = vsel %vm1223, 1e-09, 0.0
        %v1226 = vsel %vm1224, 1e-09, 0.0
        %v1227 = vadd.f32 %v1126, %v1215
        %v1228 = vadd.f32 %v1131, %v1220
        %v1229 = vmul.f32 %v1227, 0.35355338
        %v1230 = vmul.f32 %v1228, 0.35355338
        %v1231 = vadd.f32 %v1229, %v1225
        %v1232 = vadd.f32 %v1230, %v1226
        %vm1233 = vcmask 392192
        %v1234 = vsel %vm1233, %v1231, -inf
        %1235 = vmax.xlane.f32.xlu0 %v1234
        %v1236 = vpop.xlane.xlu0 %1235
        %v1237 = vsel %vm1233, %v1232, -inf
        %1238 = vmax.xlane.f32.xlu0 %v1237
        %v1239 = vpop.xlane.xlu0 %1238
        %v1240 = vsub.f32 %v1231, %v1236
        %v1241 = vsub.f32 %v1232, %v1239
        %v1242 = vmul.f32 %v1240, 1.442695
        %v1243 = vpow.pop %v1242
        %v1244 = vmul.f32 %v1241, 1.442695
        %v1245 = vpow.pop %v1244
        %v1246 = vld [vmem:[%s10] sm:$0xff]
        %v1247 = vld [vmem:[%s10 + $0x8] sm:$0xff]
        %v1248 = vld [vmem:[%s10 + $0x10] sm:$0xff]
        %v1249 = vld [vmem:[%s10 + $0x18] sm:$0xff]
        %v1250 = vld [vmem:[%s10 + $0x20] sm:$0xff]
        %v1251 = vld [vmem:[%s10 + $0x28] sm:$0xff]
        %v1253 = vsel %vm1233, %v1243, 0
        %v1256 = vsel %vm1233, %v1245, 0
        %1258 = vmatprep.subr.mxu0 0.0
        %1259 = vmatpush1.msra.mxu0 0.0
        %1260 = vmatprep.subr.mxu0 0.0
        %1261 = vmatpush1.msra.mxu0 0.0
        %1262 = vmatprep.subr.mxu0 0.0
        %1263 = vmatpush1.msra.mxu0 0.0
        %1264 = vmatprep.subr.mxu0 0.0
        %1265 = vmatpush1.msra.mxu0 0.0
        %1266 = vmatprep.subr.mxu0 0.0
        %1267 = vmatpush1.msra.mxu0 0.0
        %1268 = vmatprep.subr.mxu0 0.0
        %1269 = vmatpush1.msra.mxu0 0.0
        %1270 = vmatprep.subr.mxu0 0.0
        %1271 = vmatpush1.msra.mxu0 0.0
        %1272 = vmatprep.subr.mxu0 0.0
        %1273 = vmatpush1.msra.mxu0 0.0
        %1274 = vmatprep.subr.mxu0 0.0
        %1275 = vmatpush1.msra.mxu0 0.0
        %1276 = vmatprep.subr.mxu0 0.0
        %1277 = vmatpush1.msra.mxu0 0.0
        %1278 = vmatprep.subr.mxu0 0.0
        %1279 = vmatpush1.msra.mxu0 %v1251
        %1280 = vmatprep.subr.mxu0 0.0
        %1281 = vmatpush1.msra.mxu0 %v1250
        %1282 = vmatprep.subr.mxu0 0.0
        %1283 = vmatpush1.msra.mxu0 %v1249
        %1284 = vmatprep.subr.mxu0 0.0
        %1285 = vmatpush1.msra.mxu0 %v1248
        %1286 = vmatprep.subr.mxu0 0.0
        %1287 = vmatpush1.msra.mxu0 %v1247
        %1288 = vmatprep.subr.mxu0 0.0
        %1289 = vmatpush1.msra.mxu0 %v1246
        %1290 = vmatprep.subr.mxu0 0.0
        %1291 = vmatpush2.msra.mxu0 0.0
        %1292 = vmatprep.subr.mxu0 0.0
        %1293 = vmatpush2.msra.mxu0 0.0
        %1294 = vmatprep.subr.mxu0 0.0
        %1295 = vmatpush2.msra.mxu0 0.0
        %1296 = vmatprep.subr.mxu0 0.0
        %1297 = vmatpush2.msra.mxu0 0.0
        %1298 = vmatprep.subr.mxu0 0.0
        %1299 = vmatpush2.msra.mxu0 0.0
        %1300 = vmatprep.subr.mxu0 0.0
        %1301 = vmatpush2.msra.mxu0 0.0
        %1302 = vmatprep.subr.mxu0 0.0
        %1303 = vmatpush2.msra.mxu0 0.0
        %1304 = vmatprep.subr.mxu0 0.0
        %1305 = vmatpush2.msra.mxu0 0.0
        %1306 = vmatprep.subr.mxu0 0.0
        %1307 = vmatpush2.msra.mxu0 0.0
        %1308 = vmatprep.subr.mxu0 0.0
        %1309 = vmatpush2.msra.mxu0 0.0
        %1310 = vmatprep.subr.mxu0 0.0
        %1311 = vmatpush2.msra.mxu0 0.0
        %1312 = vmatprep.subr.mxu0 0.0
        %1313 = vmatpush2.msra.mxu0 0.0
        %1314 = vmatprep.subr.mxu0 0.0
        %1315 = vmatpush2.msra.mxu0 0.0
        %1316 = vmatprep.subr.mxu0 0.0
        %1317 = vmatpush2.msra.mxu0 0.0
        %1318 = vmatprep.subr.mxu0 0.0
        %1319 = vmatpush2.msra.mxu0 0.0
        %1320 = vmatprep.subr.mxu0 0.0
        %1321 = vmatpush2.msra.mxu0 0.0
        %1322 = vmatprep.mubr.f32.mxu0 0.0
        %1323 = vmatmul.mubr.f32.gmra.mxu0 %v1253
        %v1324 = vpop.f32.mrf.mxu0
        %v1325 = vadd.f32 0.0, %v1324
        %v1326 = vpop.f32.mrf.mxu0
        %1327 = vmatprep.mubr.f32.mxu0 0.0
        %1328 = vmatmul.mubr.f32.gmra.mxu0 %v1256
        %v1329 = vpop.f32.mrf.mxu0
        %v1330 = vadd.f32 0.0, %v1329
        %v1331 = vpop.f32.mrf.mxu0
        %1332 = vdwg.mxu0
        %v1333 = vrcp.pop %v1325
        %v1334 = vmul.f32 %v1243, %v1333
        %v1335 = vrcp.pop %v1330
        %v1336 = vmul.f32 %v1245, %v1335
        %v1337 = vld [vmem:[%s9] sm:$0xff]
        %v1338 = vld [vmem:[%s9 + $0x8] sm:$0xff]
        %v1339 = vld [vmem:[%s9 + $0x10] sm:$0xff]
        %v1340 = vld [vmem:[%s9 + $0x18] sm:$0xff]
        %v1341 = vld [vmem:[%s9 + $0x20] sm:$0xff]
        %v1342 = vld [vmem:[%s9 + $0x28] sm:$0xff]
        %v1343 = vld [vmem:[%s9 + $0x30] sm:$0xff]
        %v1344 = vld [vmem:[%s9 + $0x38] sm:$0xff]
        %v1345 = vld [vmem:[%s9 + $0x40] sm:$0xff]
        %v1346 = vld [vmem:[%s9 + $0x48] sm:$0xff]
        %v1347 = vld [vmem:[%s9 + $0x50] sm:$0xff]
        %v1348 = vld [vmem:[%s9 + $0x58] sm:$0xff]
        %v1349 = vld [vmem:[%s9 + $0x60] sm:$0xff]
        %v1350 = vld [vmem:[%s9 + $0x68] sm:$0xff]
        %v1351 = vld [vmem:[%s9 + $0x70] sm:$0xff]
        %v1352 = vld [vmem:[%s9 + $0x78] sm:$0xff]
        %v1353 = vld [vmem:[%s9 + $0x80] sm:$0xff]
        %v1354 = vld [vmem:[%s9 + $0x88] sm:$0xff]
        %v1356 = vsel %vm1233, %v1334, 0
        %v1359 = vsel %vm1233, %v1336, 0
        %1361 = vmatprep.subr.mxu0 0.0
        %1362 = vmatpush1.msra.mxu0 0.0
        %1363 = vmatprep.subr.mxu0 0.0
        %1364 = vmatpush1.msra.mxu0 0.0
        %1365 = vmatprep.subr.mxu0 0.0
        %1366 = vmatpush1.msra.mxu0 0.0
        %1367 = vmatprep.subr.mxu0 0.0
        %1368 = vmatpush1.msra.mxu0 0.0
        %1369 = vmatprep.subr.mxu0 0.0
        %1370 = vmatpush1.msra.mxu0 0.0
        %1371 = vmatprep.subr.mxu0 0.0
        %1372 = vmatpush1.msra.mxu0 0.0
        %1373 = vmatprep.subr.mxu0 0.0
        %1374 = vmatpush1.msra.mxu0 0.0
        %1375 = vmatprep.subr.mxu0 0.0
        %1376 = vmatpush1.msra.mxu0 0.0
        %1377 = vmatprep.subr.mxu0 0.0
        %1378 = vmatpush1.msra.mxu0 0.0
        %1379 = vmatprep.subr.mxu0 0.0
        %1380 = vmatpush1.msra.mxu0 0.0
        %1381 = vmatprep.subr.mxu0 %v1353
        %1382 = vmatpush1.msra.mxu0 %v1352
        %1383 = vmatprep.subr.mxu0 %v1350
        %1384 = vmatpush1.msra.mxu0 %v1349
        %1385 = vmatprep.subr.mxu0 %v1347
        %1386 = vmatpush1.msra.mxu0 %v1346
        %1387 = vmatprep.subr.mxu0 %v1344
        %1388 = vmatpush1.msra.mxu0 %v1343
        %1389 = vmatprep.subr.mxu0 %v1341
        %1390 = vmatpush1.msra.mxu0 %v1340
        %1391 = vmatprep.subr.mxu0 %v1338
        %1392 = vmatpush1.msra.mxu0 %v1337
        %1393 = vmatprep.subr.mxu0 0.0
        %1394 = vmatpush2.msra.mxu0 0.0
        %1395 = vmatprep.subr.mxu0 0.0
        %1396 = vmatpush2.msra.mxu0 0.0
        %1397 = vmatprep.subr.mxu0 0.0
        %1398 = vmatpush2.msra.mxu0 0.0
        %1399 = vmatprep.subr.mxu0 0.0
        %1400 = vmatpush2.msra.mxu0 0.0
        %1401 = vmatprep.subr.mxu0 0.0
        %1402 = vmatpush2.msra.mxu0 0.0
        %1403 = vmatprep.subr.mxu0 0.0
        %1404 = vmatpush2.msra.mxu0 0.0
        %1405 = vmatprep.subr.mxu0 0.0
        %1406 = vmatpush2.msra.mxu0 0.0
        %1407 = vmatprep.subr.mxu0 0.0
        %1408 = vmatpush2.msra.mxu0 0.0
        %1409 = vmatprep.subr.mxu0 0.0
        %1410 = vmatpush2.msra.mxu0 0.0
        %1411 = vmatprep.subr.mxu0 0.0
        %1412 = vmatpush2.msra.mxu0 0.0
        %1413 = vmatprep.subr.mxu0 0.0
        %1414 = vmatpush2.msra.mxu0 0.0
        %1415 = vmatprep.subr.mxu0 0.0
        %1416 = vmatpush2.msra.mxu0 0.0
        %1417 = vmatprep.subr.mxu0 0.0
        %1418 = vmatpush2.msra.mxu0 0.0
        %1419 = vmatprep.subr.mxu0 0.0
        %1420 = vmatpush2.msra.mxu0 0.0
        %1421 = vmatprep.subr.mxu0 0.0
        %1422 = vmatpush2.msra.mxu0 0.0
        %1423 = vmatprep.subr.mxu0 0.0
        %1424 = vmatpush2.msra.mxu0 0.0
        %1425 = vmatprep.mubr.f32.mxu0 0.0
        %1426 = vmatmul.mubr.f32.gmra.mxu0 %v1356
        %v1427 = vpop.f32.mrf.mxu0
        %v1428 = vadd.f32 0.0, %v1427
        %v1429 = vpop.f32.mrf.mxu0
        %v1430 = vadd.f32 0.0, %v1429
        %1431 = vmatprep.mubr.f32.mxu0 0.0
        %1432 = vmatmul.mubr.f32.gmra.mxu0 %v1359
        %v1433 = vpop.f32.mrf.mxu0
        %v1434 = vadd.f32 0.0, %v1433
        %v1435 = vpop.f32.mrf.mxu0
        %v1436 = vadd.f32 0.0, %v1435
        %1437 = vdwg.mxu0
        %1438 = vmatprep.subr.mxu0 0.0
        %1439 = vmatpush1.msra.mxu0 0.0
        %1440 = vmatprep.subr.mxu0 0.0
        %1441 = vmatpush1.msra.mxu0 0.0
        %1442 = vmatprep.subr.mxu0 0.0
        %1443 = vmatpush1.msra.mxu0 0.0
        %1444 = vmatprep.subr.mxu0 0.0
        %1445 = vmatpush1.msra.mxu0 0.0
        %1446 = vmatprep.subr.mxu0 0.0
        %1447 = vmatpush1.msra.mxu0 0.0
        %1448 = vmatprep.subr.mxu0 0.0
        %1449 = vmatpush1.msra.mxu0 0.0
        %1450 = vmatprep.subr.mxu0 0.0
        %1451 = vmatpush1.msra.mxu0 0.0
        %1452 = vmatprep.subr.mxu0 0.0
        %1453 = vmatpush1.msra.mxu0 0.0
        %1454 = vmatprep.subr.mxu0 0.0
        %1455 = vmatpush1.msra.mxu0 0.0
        %1456 = vmatprep.subr.mxu0 0.0
        %1457 = vmatpush1.msra.mxu0 0.0
        %1458 = vmatprep.subr.mxu0 0.0
        %1459 = vmatpush1.msra.mxu0 %v1354
        %1460 = vmatprep.subr.mxu0 0.0
        %1461 = vmatpush1.msra.mxu0 %v1351
        %1462 = vmatprep.subr.mxu0 0.0
        %1463 = vmatpush1.msra.mxu0 %v1348
        %1464 = vmatprep.subr.mxu0 0.0
        %1465 = vmatpush1.msra.mxu0 %v1345
        %1466 = vmatprep.subr.mxu0 0.0
        %1467 = vmatpush1.msra.mxu0 %v1342
        %1468 = vmatprep.subr.mxu0 0.0
        %1469 = vmatpush1.msra.mxu0 %v1339
        %1470 = vmatprep.subr.mxu0 0.0
        %1471 = vmatpush2.msra.mxu0 0.0
        %1472 = vmatprep.subr.mxu0 0.0
        %1473 = vmatpush2.msra.mxu0 0.0
        %1474 = vmatprep.subr.mxu0 0.0
        %1475 = vmatpush2.msra.mxu0 0.0
        %1476 = vmatprep.subr.mxu0 0.0
        %1477 = vmatpush2.msra.mxu0 0.0
        %1478 = vmatprep.subr.mxu0 0.0
        %1479 = vmatpush2.msra.mxu0 0.0
        %1480 = vmatprep.subr.mxu0 0.0
        %1481 = vmatpush2.msra.mxu0 0.0
        %1482 = vmatprep.subr.mxu0 0.0
        %1483 = vmatpush2.msra.mxu0 0.0
        %1484 = vmatprep.subr.mxu0 0.0
        %1485 = vmatpush2.msra.mxu0 0.0
        %1486 = vmatprep.subr.mxu0 0.0
        %1487 = vmatpush2.msra.mxu0 0.0
        %1488 = vmatprep.subr.mxu0 0.0
        %1489 = vmatpush2.msra.mxu0 0.0
        %1490 = vmatprep.subr.mxu0 0.0
        %1491 = vmatpush2.msra.mxu0 0.0
        %1492 = vmatprep.subr.mxu0 0.0
        %1493 = vmatpush2.msra.mxu0 0.0
        %1494 = vmatprep.subr.mxu0 0.0
        %1495 = vmatpush2.msra.mxu0 0.0
        %1496 = vmatprep.subr.mxu0 0.0
        %1497 = vmatpush2.msra.mxu0 0.0
        %1498 = vmatprep.subr.mxu0 0.0
        %1499 = vmatpush2.msra.mxu0 0.0
        %1500 = vmatprep.subr.mxu0 0.0
        %1501 = vmatpush2.msra.mxu0 0.0
        %1502 = vmatprep.mubr.f32.mxu0 0.0
        %1503 = vmatmul.mubr.f32.gmra.mxu0 %v1356
        %v1504 = vpop.f32.mrf.mxu0
        %v1505 = vadd.f32 0.0, %v1504
        %v1506 = vpop.f32.mrf.mxu0
        %1507 = vmatprep.mubr.f32.mxu0 0.0
        %1508 = vmatmul.mubr.f32.gmra.mxu0 %v1359
        %v1509 = vpop.f32.mrf.mxu0
        %v1510 = vadd.f32 0.0, %v1509
        %v1511 = vpop.f32.mrf.mxu0
        %1512 = vdwg.mxu0
        %v1522 = vrot.slane %v927, 1
        %v1523 = vrot.slane %v928, 1
        %v1524 = vsel %vm798, %v1522, %v1523
        %v1525 = vrot.slane %v930, 1
        %v1526 = vrot.slane %v931, 1
        %v1527 = vsel %vm798, %v1525, %v1526
        %v1528 = vrot.slane %v933, 1
        %v1529 = vrot.slane %v934, 1
        %v1530 = vsel %vm798, %v1528, %v1529
        %v1531 = vrot.slane %v929, 1
        %v1532 = vsel %vm798, %v1523, %v1531
        %v1533 = vrot.slane %v932, 1
        %v1534 = vsel %vm798, %v1526, %v1533
        %v1535 = vrot.slane %v935, 1
        %v1536 = vsel %vm798, %v1529, %v1535
        %v1543 = vmul.f32 %v1428, %v1524
        %v1544 = vmul.f32 %v1430, %v1527
        %v1545 = vmul.f32 %v1505, %v1530
        %v1546 = vmul.f32 %v1434, %v1532
        %v1547 = vmul.f32 %v1436, %v1534
        %v1548 = vmul.f32 %v1510, %v1536
        %v1549 = vld [vmem:[%s11] sm:$0xff]
        %v1550 = vld [vmem:[%s11 + $0x8] sm:$0xff]
        %v1551 = vld [vmem:[%s11 + $0x10] sm:$0xff]
        %v1552 = vld [vmem:[%s11 + $0x18] sm:$0xff]
        %v1553 = vld [vmem:[%s11 + $0x20] sm:$0xff]
        %v1554 = vld [vmem:[%s11 + $0x28] sm:$0xff]
        %v1555 = vld [vmem:[%s11 + $0x30] sm:$0xff]
        %v1556 = vld [vmem:[%s11 + $0x38] sm:$0xff]
        %v1557 = vld [vmem:[%s11 + $0x40] sm:$0xff]
        %v1558 = vld [vmem:[%s11 + $0x48] sm:$0xff]
        %v1559 = vld [vmem:[%s11 + $0x50] sm:$0xff]
        %v1560 = vld [vmem:[%s11 + $0x58] sm:$0xff]
        %v1561 = vld [vmem:[%s11 + $0x60] sm:$0xff]
        %v1562 = vld [vmem:[%s11 + $0x68] sm:$0xff]
        %v1563 = vld [vmem:[%s11 + $0x70] sm:$0xff]
        %v1564 = vld [vmem:[%s11 + $0x78] sm:$0xff]
        %v1565 = vld [vmem:[%s11 + $0x80] sm:$0xff]
        %v1566 = vld [vmem:[%s11 + $0x88] sm:$0xff]
        %v1567 = vld [vmem:[%s11 + $0x90] sm:$0xff]
        %v1568 = vld [vmem:[%s11 + $0x98] sm:$0xff]
        %v1569 = vld [vmem:[%s11 + $0xa0] sm:$0xff]
        %v1570 = vld [vmem:[%s11 + $0xa8] sm:$0xff]
        %v1571 = vld [vmem:[%s11 + $0xb0] sm:$0xff]
        %v1572 = vld [vmem:[%s11 + $0xb8] sm:$0xff]
        %v1573 = vld [vmem:[%s11 + $0xc0] sm:$0xff]
        %v1574 = vld [vmem:[%s11 + $0xc8] sm:$0xff]
        %v1575 = vld [vmem:[%s11 + $0xd0] sm:$0xff]
        %v1576 = vld [vmem:[%s11 + $0xd8] sm:$0xff]
        %v1577 = vld [vmem:[%s11 + $0xe0] sm:$0xff]
        %v1578 = vld [vmem:[%s11 + $0xe8] sm:$0xff]
        %v1579 = vld [vmem:[%s11 + $0xf0] sm:$0xff]
        %v1580 = vld [vmem:[%s11 + $0xf8] sm:$0xff]
        %v1581 = vld [vmem:[%s11 + $0x100] sm:$0xff]
        %v1582 = vld [vmem:[%s11 + $0x108] sm:$0xff]
        %v1583 = vld [vmem:[%s11 + $0x110] sm:$0xff]
        %v1584 = vld [vmem:[%s11 + $0x118] sm:$0xff]
        %v1585 = vld [vmem:[%s11 + $0x120] sm:$0xff]
        %v1586 = vld [vmem:[%s11 + $0x128] sm:$0xff]
        %v1587 = vld [vmem:[%s11 + $0x130] sm:$0xff]
        %v1588 = vld [vmem:[%s11 + $0x138] sm:$0xff]
        %v1589 = vld [vmem:[%s11 + $0x140] sm:$0xff]
        %v1590 = vld [vmem:[%s11 + $0x148] sm:$0xff]
        %v1591 = vld [vmem:[%s11 + $0x150] sm:$0xff]
        %v1592 = vld [vmem:[%s11 + $0x158] sm:$0xff]
        %v1593 = vld [vmem:[%s11 + $0x160] sm:$0xff]
        %v1594 = vld [vmem:[%s11 + $0x168] sm:$0xff]
        %v1595 = vld [vmem:[%s11 + $0x170] sm:$0xff]
        %v1596 = vld [vmem:[%s11 + $0x178] sm:$0xff]
        %1597 = vmatprep.subr.mxu0 0.0
        %1598 = vmatpush1.msra.mxu0 %v1564
        %1599 = vmatprep.subr.mxu0 0.0
        %1600 = vmatpush1.msra.mxu0 %v1563
        %1601 = vmatprep.subr.mxu0 0.0
        %1602 = vmatpush1.msra.mxu0 %v1562
        %1603 = vmatprep.subr.mxu0 0.0
        %1604 = vmatpush1.msra.mxu0 %v1561
        %1605 = vmatprep.subr.mxu0 0.0
        %1606 = vmatpush1.msra.mxu0 %v1560
        %1607 = vmatprep.subr.mxu0 0.0
        %1608 = vmatpush1.msra.mxu0 %v1559
        %1609 = vmatprep.subr.mxu0 0.0
        %1610 = vmatpush1.msra.mxu0 %v1558
        %1611 = vmatprep.subr.mxu0 0.0
        %1612 = vmatpush1.msra.mxu0 %v1557
        %1613 = vmatprep.subr.mxu0 0.0
        %1614 = vmatpush1.msra.mxu0 %v1556
        %1615 = vmatprep.subr.mxu0 0.0
        %1616 = vmatpush1.msra.mxu0 %v1555
        %1617 = vmatprep.subr.mxu0 0.0
        %1618 = vmatpush1.msra.mxu0 %v1554
        %1619 = vmatprep.subr.mxu0 0.0
        %1620 = vmatpush1.msra.mxu0 %v1553
        %1621 = vmatprep.subr.mxu0 0.0
        %1622 = vmatpush1.msra.mxu0 %v1552
        %1623 = vmatprep.subr.mxu0 0.0
        %1624 = vmatpush1.msra.mxu0 %v1551
        %1625 = vmatprep.subr.mxu0 0.0
        %1626 = vmatpush1.msra.mxu0 %v1550
        %1627 = vmatprep.subr.mxu0 0.0
        %1628 = vmatpush1.msra.mxu0 %v1549
        %1629 = vmatprep.subr.mxu0 0.0
        %1630 = vmatpush2.msra.mxu0 %v1580
        %1631 = vmatprep.subr.mxu0 0.0
        %1632 = vmatpush2.msra.mxu0 %v1579
        %1633 = vmatprep.subr.mxu0 0.0
        %1634 = vmatpush2.msra.mxu0 %v1578
        %1635 = vmatprep.subr.mxu0 0.0
        %1636 = vmatpush2.msra.mxu0 %v1577
        %1637 = vmatprep.subr.mxu0 0.0
        %1638 = vmatpush2.msra.mxu0 %v1576
        %1639 = vmatprep.subr.mxu0 0.0
        %1640 = vmatpush2.msra.mxu0 %v1575
        %1641 = vmatprep.subr.mxu0 0.0
        %1642 = vmatpush2.msra.mxu0 %v1574
        %1643 = vmatprep.subr.mxu0 0.0
        %1644 = vmatpush2.msra.mxu0 %v1573
        %1645 = vmatprep.subr.mxu0 0.0
        %1646 = vmatpush2.msra.mxu0 %v1572
        %1647 = vmatprep.subr.mxu0 0.0
        %1648 = vmatpush2.msra.mxu0 %v1571
        %1649 = vmatprep.subr.mxu0 0.0
        %1650 = vmatpush2.msra.mxu0 %v1570
        %1651 = vmatprep.subr.mxu0 0.0
        %1652 = vmatpush2.msra.mxu0 %v1569
        %1653 = vmatprep.subr.mxu0 0.0
        %1654 = vmatpush2.msra.mxu0 %v1568
        %1655 = vmatprep.subr.mxu0 0.0
        %1656 = vmatpush2.msra.mxu0 %v1567
        %1657 = vmatprep.subr.mxu0 0.0
        %1658 = vmatpush2.msra.mxu0 %v1566
        %1659 = vmatprep.subr.mxu0 0.0
        %1660 = vmatpush2.msra.mxu0 %v1565
        %1661 = vmatprep.mubr.f32.mxu0 %v1544
        %1662 = vmatmul.mubr.f32.gmra.mxu0 %v1543
        %v1663 = vpop.f32.mrf.mxu0
        %v1664 = vadd.f32 0.0, %v1663
        %v1665 = vpop.f32.mrf.mxu0
        %1666 = vmatprep.mubr.f32.mxu0 %v1547
        %1667 = vmatmul.mubr.f32.gmra.mxu0 %v1546
        %v1668 = vpop.f32.mrf.mxu0
        %v1669 = vadd.f32 0.0, %v1668
        %v1670 = vpop.f32.mrf.mxu0
        %1671 = vdwg.mxu0
        %1672 = vmatprep.subr.mxu0 0.0
        %1673 = vmatpush1.msra.mxu0 %v1596
        %1674 = vmatprep.subr.mxu0 0.0
        %1675 = vmatpush1.msra.mxu0 %v1595
        %1676 = vmatprep.subr.mxu0 0.0
        %1677 = vmatpush1.msra.mxu0 %v1594
        %1678 = vmatprep.subr.mxu0 0.0
        %1679 = vmatpush1.msra.mxu0 %v1593
        %1680 = vmatprep.subr.mxu0 0.0
        %1681 = vmatpush1.msra.mxu0 %v1592
        %1682 = vmatprep.subr.mxu0 0.0
        %1683 = vmatpush1.msra.mxu0 %v1591
        %1684 = vmatprep.subr.mxu0 0.0
        %1685 = vmatpush1.msra.mxu0 %v1590
        %1686 = vmatprep.subr.mxu0 0.0
        %1687 = vmatpush1.msra.mxu0 %v1589
        %1688 = vmatprep.subr.mxu0 0.0
        %1689 = vmatpush1.msra.mxu0 %v1588
        %1690 = vmatprep.subr.mxu0 0.0
        %1691 = vmatpush1.msra.mxu0 %v1587
        %1692 = vmatprep.subr.mxu0 0.0
        %1693 = vmatpush1.msra.mxu0 %v1586
        %1694 = vmatprep.subr.mxu0 0.0
        %1695 = vmatpush1.msra.mxu0 %v1585
        %1696 = vmatprep.subr.mxu0 0.0
        %1697 = vmatpush1.msra.mxu0 %v1584
        %1698 = vmatprep.subr.mxu0 0.0
        %1699 = vmatpush1.msra.mxu0 %v1583
        %1700 = vmatprep.subr.mxu0 0.0
        %1701 = vmatpush1.msra.mxu0 %v1582
        %1702 = vmatprep.subr.mxu0 0.0
        %1703 = vmatpush1.msra.mxu0 %v1581
        %1704 = vmatprep.subr.mxu0 0.0
        %1705 = vmatpush2.msra.mxu0 0.0
        %1706 = vmatprep.subr.mxu0 0.0
        %1707 = vmatpush2.msra.mxu0 0.0
        %1708 = vmatprep.subr.mxu0 0.0
        %1709 = vmatpush2.msra.mxu0 0.0
        %1710 = vmatprep.subr.mxu0 0.0
        %1711 = vmatpush2.msra.mxu0 0.0
        %1712 = vmatprep.subr.mxu0 0.0
        %1713 = vmatpush2.msra.mxu0 0.0
        %1714 = vmatprep.subr.mxu0 0.0
        %1715 = vmatpush2.msra.mxu0 0.0
        %1716 = vmatprep.subr.mxu0 0.0
        %1717 = vmatpush2.msra.mxu0 0.0
        %1718 = vmatprep.subr.mxu0 0.0
        %1719 = vmatpush2.msra.mxu0 0.0
        %1720 = vmatprep.subr.mxu0 0.0
        %1721 = vmatpush2.msra.mxu0 0.0
        %1722 = vmatprep.subr.mxu0 0.0
        %1723 = vmatpush2.msra.mxu0 0.0
        %1724 = vmatprep.subr.mxu0 0.0
        %1725 = vmatpush2.msra.mxu0 0.0
        %1726 = vmatprep.subr.mxu0 0.0
        %1727 = vmatpush2.msra.mxu0 0.0
        %1728 = vmatprep.subr.mxu0 0.0
        %1729 = vmatpush2.msra.mxu0 0.0
        %1730 = vmatprep.subr.mxu0 0.0
        %1731 = vmatpush2.msra.mxu0 0.0
        %1732 = vmatprep.subr.mxu0 0.0
        %1733 = vmatpush2.msra.mxu0 0.0
        %1734 = vmatprep.subr.mxu0 0.0
        %1735 = vmatpush2.msra.mxu0 0.0
        %1736 = vmatprep.mubr.f32.mxu0 0.0
        %1737 = vmatmul.mubr.f32.gmra.mxu0 %v1545
        %v1738 = vpop.f32.mrf.mxu0
        %v1739 = vadd.f32 %v1664, %v1738
        %v1740 = vpop.f32.mrf.mxu0
        %1741 = vmatprep.mubr.f32.mxu0 0.0
        %1742 = vmatmul.mubr.f32.gmra.mxu0 %v1548
        %v1743 = vpop.f32.mrf.mxu0
        %v1744 = vadd.f32 %v1669, %v1743
        %v1745 = vpop.f32.mrf.mxu0
        %1746 = vdwg.mxu0
        %1747 = vst.msk [vmem:[%s467] sm:$0xff] %vm509, %v1739
        %1748 = vst.msk [vmem:[%s467 + $0x8] sm:$0xff] %vm509, %v1744
        %1749 = vst.msk [vmem:[%s474] sm:$0xff] %vm1233, %v1334
        %1750 = vst.msk [vmem:[%s474 + $0x8] sm:$0xff] %vm1233, %v1336
        %s1751 = sand.u32 %s306, 1
        %s1752 = scalar_lea.sflag [#allocation3], %s1751
        %s1753 = sand.u32 %s306, 1
        %s1754 = smul.addr %s1753, 16
        %s1755 = scalar_lea.vmem [#allocation2], %s1754
        %s1756 = sand.u32 %s332, 1
        %s1757 = scalar_lea.sflag [#allocation5], %s1756
        %s1758 = sand.u32 %s332, 1
        %s1759 = smul.addr %s1758, 16
        %s1760 = scalar_lea.vmem [#allocation4], %s1759
        // Predicated region
        $region69: #{tpu_custom_call.1} parent=67 // pred_check
          %p1761 = pneg %p316
        $region70: #{tpu_custom_call.1} parent=67 // pred_check_branch
          %1763 = sbr.rel (%p1761) target = $region72
        $region71: #{tpu_custom_call.1} parent=67 // pred_region
          %s1765 = ssub.s32 256, 256
          %1766 = vsyncadd %s1752, %s1765
          %s1767 = smul.addr %s31, 2
          %s1768 = smul.addr %s1767, 128
          %s1769 = scalar_lea.hbm %s12, %s1768
          %s1770 = sshll.u32 %s1755, 4
          %s1771 = int_to_ptr.vmem [resolvable:$true] %s1770
          %1776 = dma.vmem_to_hbm [thread:$0]  %s1771, 256, %s1769, %s1752, 128, 128, 8
        $region72: #{tpu_custom_call.1} parent=67 // pred_fallthru
          _
        // Predicated region
        $region73: #{tpu_custom_call.1} parent=67 // pred_check
          %p1777 = pneg %p342
        $region74: #{tpu_custom_call.1} parent=67 // pred_check_branch
          %1779 = sbr.rel (%p1777) target = $region76
        $region75: #{tpu_custom_call.1} parent=67 // pred_region
          %s1781 = ssub.s32 256, 256
          %1782 = vsyncadd %s1757, %s1781
          %s1783 = smul.addr %s31, 2
          %s1784 = smul.addr %s1783, 128
          %s1785 = scalar_lea.hbm %s13, %s1784
          %s1786 = sshll.u32 %s1760, 4
          %s1787 = int_to_ptr.vmem [resolvable:$true] %s1786
          %1792 = dma.vmem_to_hbm [thread:$0]  %s1787, 256, %s1785, %s1757, 128, 128, 8
        $region76: #{tpu_custom_call.1} parent=67 // pred_fallthru
          _
      $region68: #{tpu_custom_call.1} parent=5 // pred_fallthru
        _
      %p1793 = scmp.le.s32.totalorder 2, %s26
      // Predicated region
      $region77: #{tpu_custom_call.1} parent=5 // pred_check
        %p1794 = pneg %p1793
      $region78: #{tpu_custom_call.1} parent=5 // pred_check_branch
        %1796 = sbr.rel (%p1794) target = $region80
      $region79: #{tpu_custom_call.1} parent=5 // pred_region
        %s1797 = ssub.s32 %s26, 2
        // Predicated region
        $region81: #{tpu_custom_call.1} parent=79 // pred_check
          %p1798 = pneg %p322
        $region82: #{tpu_custom_call.1} parent=79 // pred_check_branch
          %1800 = sbr.rel (%p1798) target = $region84
        $region83: #{tpu_custom_call.1} parent=79 // pred_region
          %s1801 = sand.u32 %s307, 1
          %s1802 = scalar_lea.sflag [#allocation3], %s1801
          %s1803 = sand.u32 %s307, 1
          %s1804 = smul.addr %s1803, 16
          %s1805 = scalar_lea.vmem [#allocation2], %s1804
          %1806 = dma.done %s1802, 256
        $region84: #{tpu_custom_call.1} parent=79 // pred_fallthru
          _
        // Predicated region
        $region85: #{tpu_custom_call.1} parent=79 // pred_check
          %p1807 = pneg %p348
        $region86: #{tpu_custom_call.1} parent=79 // pred_check_branch
          %1809 = sbr.rel (%p1807) target = $region88
        $region87: #{tpu_custom_call.1} parent=79 // pred_region
          %s1810 = sand.u32 %s333, 1
          %s1811 = scalar_lea.sflag [#allocation5], %s1810
          %s1812 = sand.u32 %s333, 1
          %s1813 = smul.addr %s1812, 16
          %s1814 = scalar_lea.vmem [#allocation4], %s1813
          %1815 = dma.done %s1811, 256
        $region88: #{tpu_custom_call.1} parent=79 // pred_fallthru
          _
      $region80: #{tpu_custom_call.1} parent=5 // pred_fallthru
        _
    $region6: #{tpu_custom_call.1} parent=1 // loop_footer
      %s30 = sadd.s32 1, %s26
    $region7: #{tpu_custom_call.1} parent=1 // loop_footer_branch
      %25 = sbr.rel target = $region3
    $region8: #{tpu_custom_call.1} parent=1 // loop_exit
      _
    %1816 = vsyncpa [#allocation3], 1
    %s1817 = scalar_lea.sflag [#allocation3], 1
    %1818 = vsyncpa %s1817, 1
    %1819 = vsyncpa [#allocation5], 1
    %s1820 = scalar_lea.sflag [#allocation5], 1
    %1821 = vsyncpa %s1820, 1

</llo_original>
